<compile_context>
chip_gen: v6e
topology: v6e:2x2x1
jax: 0.10.0
libtpu: 0.0.40
codegen_flags: <defaults>
</compile_context>

<pallas_src>
import functools

import jax
import jax.numpy as jnp
from jax import lax
from jax.experimental import pallas as pl
from jax.experimental.pallas import tpu as pltpu


def _round_up(x, m):
    return (x + m - 1) // m * m


# ----------------------------- Pallas kernel ---------------------------------
def _lstm_fc_kernel(num_layers, seq, bp, H, W, sel_pairs, *refs):
    """Multi-layer LSTM recurrence + the consumed slice of the FC head.

    Weight layout: the whole i|f|g|o gate vector (4*H) is packed into one
    W-lane group (W = round_up(4H, 128) = 128 here).  Input-feature rows of
    w_hh / w_ih beyond H are zero, so garbage in h lanes [H:W] never
    contaminates real lanes.
    """
    x_ref = refs[0]                                   # (seq*bp, emb)
    layer_refs = refs[1:1 + 3 * num_layers]           # (w_ih_p, w_hh_p, b_p) * L
    w_fc_ref = refs[1 + 3 * num_layers]               # (1, W)   fc row out_dim-1
    b_fc_ref = refs[2 + 3 * num_layers]               # (1, 1)
    out_ref = refs[3 + 3 * num_layers]                # (batch, 1)
    hbuf = refs[4 + 3 * num_layers]                   # scratch (seq*bp, W) layer act.
    pbuf = refs[5 + 3 * num_layers]                   # scratch (seq*bp, W) hoisted proj

    sel_ts = {t for t, _ in sel_pairs}
    needed = {}                                       # t -> last-layer h at step t

    for layer in range(num_layers):
        w_ih_ref = layer_refs[3 * layer]
        w_hh_ref = layer_refs[3 * layer + 1]
        b_ref = layer_refs[3 * layer + 2]
        last = layer == num_layers - 1

        # Hoisted input projection: ONE matmul over all timesteps, bias fused.
        # Stored in pbuf so per-step access is a tile-aligned (8, W) load and the
        # whole slab is not kept live as vregs across the unrolled recurrence.
        layer_in = x_ref[...] if layer == 0 else hbuf[...]
        pbuf[...] = (jnp.dot(layer_in, w_ih_ref[...],
                             preferred_element_type=jnp.float32) + b_ref[...])

        # w_hh held as a value across the unrolled loop (rows [H:W] are zero).
        # TODO(synk): hold it resident in the MXU across steps via
        # pltpu.matmul_push_rhs / matmul_acc_lhs / matmul_pop (single 128x128 tile).
        w_hh = w_hh_ref[...]

        h = jnp.zeros((bp, W), jnp.float32)
        c = jnp.zeros((bp, W), jnp.float32)
        # TODO(synk): for large seq switch to lax.fori_loop(..., unroll=k) to
        # bound live ranges / code size; at seq=8 full unroll is fine.
        for t in range(seq):
            # One (bp, W) x (W, W) MXU pass per step (packed gates => N=128).
            gates = pbuf[t * bp:(t + 1) * bp, :] + jnp.dot(
                h, w_hh, preferred_element_type=jnp.float32)       # (bp, W)
            # One full-vreg sigmoid + one full-vreg tanh cover all four gates.
            sig = jax.nn.sigmoid(gates)
            tnh = jnp.tanh(gates)
            # Align each gate block to the cell lanes [0:H] with XLU rotates
            # (pltpu.roll matches jnp.roll semantics; shifts are static/positive).
            i_g = sig                                           # i already at [0:H]
            f_g = pltpu.roll(sig, shift=W - H, axis=1)          # f -> lanes [0:H]
            g_g = pltpu.roll(tnh, shift=W - 2 * H, axis=1)      # g -> lanes [0:H]
            o_g = pltpu.roll(sig, shift=W - 3 * H, axis=1)      # o -> lanes [0:H]
            c = f_g * c + i_g * g_g            # lanes [0:H] valid, rest bounded junk
            h = o_g * jnp.tanh(c)
            if last:
                if t in sel_ts:                # keep only consumed timesteps
                    needed[t] = h
            else:
                # tile-aligned, unmasked (8, W) store
                hbuf[t * bp:(t + 1) * bp, :] = h

    # FC restricted to what out.view(batch, -1)[:, -1] actually consumes:
    # output b == fc(h[t_b, b'_b])[out_dim - 1].  One gathered slab, one reduce.
    rows = [needed[t][b:b + 1, :] for (t, b) in sel_pairs]
    slab = jnp.concatenate(rows, axis=0) if len(rows) > 1 else rows[0]   # (batch, W)
    out_ref[...] = (jnp.sum(slab * w_fc_ref[...], axis=1, keepdims=True)
                    + b_fc_ref[...])


# --------------------------- One-time weight repack ---------------------------
def prepare_params(params, *, num_layers, embedding_dim, hidden_dim, output_dim):
    """Transpose, fuse the two biases and pack all 4 gates into one 128-lane
    group (zero-padded to W lanes / W input rows).  Done once, not per call."""
    H = hidden_dim
    W = _round_up(4 * H, 128)        # packed i|f|g|o group width (128 for H=32)
    layers = []
    for layer in range(num_layers):
        w_ih, w_hh, b_ih, b_hh = params["lstm"][layer]     # (4H,in),(4H,H),(4H,),(4H,)
        in_real = embedding_dim if layer == 0 else H
        in_rows = embedding_dim if layer == 0 else W       # pad hidden inputs to W rows
        w_ih_p = (jnp.zeros((in_rows, W), jnp.float32)
                  .at[:in_real, :4 * H].set(jnp.transpose(w_ih).astype(jnp.float32)))
        w_hh_p = (jnp.zeros((W, W), jnp.float32)
                  .at[:H, :4 * H].set(jnp.transpose(w_hh).astype(jnp.float32)))
        b_p = (jnp.zeros((1, W), jnp.float32)
               .at[0, :4 * H].set((b_ih + b_hh).astype(jnp.float32)))
        layers.append((w_ih_p, w_hh_p, b_p))
    w_fc_row = (jnp.zeros((1, W), jnp.float32)
                .at[0, :H].set(params["fc_w"][output_dim - 1, :].astype(jnp.float32)))
    b_fc = params["fc_b"][output_dim - 1].reshape(1, 1).astype(jnp.float32)
    # TODO(synk): carry weights in bf16 on v6e/v7x at larger hidden_dim (keep
    # gate math / c / h in f32, mandatory on v5e which has no bf16 VPU/EUP).
    return {"H": H, "W": W,
            "embedding": params["embedding"].astype(jnp.float32),
            "layers": layers, "w_fc_row": w_fc_row, "b_fc": b_fc}


# ------------------------------- Forward wrapper -------------------------------
def basic_lstm_forward(x_tokens, packed, *, num_layers):
    seq, batch = x_tokens.shape
    H, W = packed["H"], packed["W"]
    bp = _round_up(batch, 8)                 # pad batch to full sublane tiles
    emb_dim = packed["embedding"].shape[1]

    # Embedding lookup (glue), laid out (t, b_padded)-major so every per-step
    # kernel access is an aligned (8, W) tile.
    embed = jnp.take(packed["embedding"], x_tokens, axis=0)          # (seq,batch,emb)
    x_pad = (jnp.zeros((seq, bp, emb_dim), jnp.float32)
             .at[:, :batch, :].set(embed.astype(jnp.float32)))
    x_pad = x_pad.reshape(seq * bp, emb_dim)

    # PyTorch's out.view(batch, -1)[:, -1] consumes flat logits row
    # r_b = (b+1)*seq - 1 at channel out_dim-1, i.e. hidden row (t_b, b'_b) below.
    sel_pairs = tuple((((b + 1) * seq - 1) // batch, ((b + 1) * seq - 1) % batch)
                      for b in range(batch))

    kernel_inputs = [x_pad]
    for w_ih_p, w_hh_p, b_p in packed["layers"]:
        kernel_inputs += [w_ih_p, w_hh_p, b_p]
    kernel_inputs += [packed["w_fc_row"], packed["b_fc"]]

    # Explicit VMEM budget + advisory cost estimate.
    in_bytes = sum(int(a.size) * a.dtype.itemsize for a in kernel_inputs)
    scratch_bytes = 2 * seq * bp * W * 4
    out_bytes = batch * 4
    vmem_limit = int(max(8 << 20, 4 * (in_bytes + scratch_bytes + out_bytes)))

    flops = 0
    for w_ih_p, w_hh_p, _ in packed["layers"]:
        flops += 2 * (seq * bp) * w_ih_p.shape[0] * w_ih_p.shape[1]   # hoisted proj
        flops += 2 * seq * bp * w_hh_p.shape[0] * w_hh_p.shape[1]     # recurrence
    flops += 2 * batch * W                                            # fc slice
    transcendentals = 3 * seq * num_layers * bp * W

    kernel = functools.partial(_lstm_fc_kernel, num_layers, seq, bp, H, W, sel_pairs)
    out = pl.pallas_call(
        kernel,
        out_shape=jax.ShapeDtypeStruct((batch, 1), jnp.float32),
        in_specs=[pl.BlockSpec(memory_space=pltpu.MemorySpace.VMEM)
                  for _ in kernel_inputs],
        out_specs=pl.BlockSpec(memory_space=pltpu.MemorySpace.VMEM),
        scratch_shapes=[pltpu.VMEM((seq * bp, W), jnp.float32),   # hbuf
                        pltpu.VMEM((seq * bp, W), jnp.float32)],  # pbuf
        compiler_params=pltpu.CompilerParams(vmem_limit_bytes=vmem_limit),
        cost_estimate=pl.CostEstimate(flops=int(flops),
                                      transcendentals=int(transcendentals),
                                      bytes_accessed=int(in_bytes + out_bytes)),
        # Single grid-less invocation: latency-bound and fully VMEM-resident at
        # this size.
        # TODO(synk): at realistic batch add a batch-parallel grid axis
        # (dimension_semantics=("parallel",)) so v7x's 2 TensorCores are used,
        # and stream per-layer weights (pl.ANY + make_async_copy) if they
        # outgrow v7x's 64 MiB VMEM.
    )(*kernel_inputs)
    return out[:, 0]                                   # (batch,)


# --------------------------- Pure-JAX reference --------------------------------
def _reference_forward(x_tokens, params, *, num_layers, hidden_dim, output_dim):
    seq, batch = x_tokens.shape
    h_in = jnp.take(params["embedding"], x_tokens, axis=0).astype(jnp.float32)
    for layer in range(num_layers):
        w_ih, w_hh, b_ih, b_hh = params["lstm"][layer]

        def step(carry, x_t):
            h, c = carry
            gates = x_t @ w_ih.T + h @ w_hh.T + b_ih + b_hh
            i_g = jax.nn.sigmoid(gates[:, 0 * hidden_dim:1 * hidden_dim])
            f_g = jax.nn.sigmoid(gates[:, 1 * hidden_dim:2 * hidden_dim])
            g_g = jnp.tanh(gates[:, 2 * hidden_dim:3 * hidden_dim])
            o_g = jax.nn.sigmoid(gates[:, 3 * hidden_dim:4 * hidden_dim])
            c_new = f_g * c + i_g * g_g
            h_new = o_g * jnp.tanh(c_new)
            return (h_new, c_new), h_new

        init = (jnp.zeros((batch, hidden_dim), jnp.float32),) * 2
        _, h_in = lax.scan(step, init, h_in)
    flat = h_in.reshape(-1, hidden_dim)
    out = flat @ params["fc_w"].T + params["fc_b"]
    return out.reshape(-1).reshape(batch, -1)[:, -1]


# --------------------------------- Main -----------------------------------------
if __name__ == "__main__":
    # Small, deterministic config (mirrors args.* in the module __init__)
    input_dim = 50        # vocab size
    embedding_dim = 16
    hidden_dim = 32
    num_layers = 2
    output_dim = 4
    seq_len, batch = 8, 2

    key = jax.random.PRNGKey(0)
    keys = iter(jax.random.split(key, 32))

    def rnd(shape, scale=0.1):
        return (scale * jax.random.normal(next(keys), shape)).astype(jnp.float32)

    lstm_params = []
    in_feat = embedding_dim
    for _ in range(num_layers):
        lstm_params.append((rnd((4 * hidden_dim, in_feat)),
                            rnd((4 * hidden_dim, hidden_dim)),
                            rnd((4 * hidden_dim,)),
                            rnd((4 * hidden_dim,))))
        in_feat = hidden_dim

    params = {
        "embedding": rnd((input_dim, embedding_dim), scale=1.0),
        "lstm": lstm_params,
        "fc_w": rnd((output_dim, hidden_dim)),
        "fc_b": rnd((output_dim,)),
    }

    x = jax.random.randint(next(keys), (seq_len, batch), 0, input_dim,
                           dtype=jnp.int32)

    packed = prepare_params(params, num_layers=num_layers,
                            embedding_dim=embedding_dim,
                            hidden_dim=hidden_dim, output_dim=output_dim)

    out = basic_lstm_forward(x, packed, num_layers=num_layers)
    out = jax.block_until_ready(out)

    ref = _reference_forward(x, params, num_layers=num_layers,
                             hidden_dim=hidden_dim, output_dim=output_dim)
    assert out.shape == (batch,)
    assert jnp.allclose(out, ref, atol=2e-5, rtol=1e-5)

    print("KERNEL_OK")
</pallas_src>

<mosaic_0001>
module attributes {stable_mosaic.version = 11 : i64} {
  func.func @_lstm_fc_kernel(%arg0: memref<64x16xf32, #tpu.memory_space<vmem>>, %arg1: memref<16x128xf32, #tpu.memory_space<vmem>>, %arg2: memref<128x128xf32, #tpu.memory_space<vmem>>, %arg3: memref<1x128xf32, #tpu.memory_space<vmem>>, %arg4: memref<128x128xf32, #tpu.memory_space<vmem>>, %arg5: memref<128x128xf32, #tpu.memory_space<vmem>>, %arg6: memref<1x128xf32, #tpu.memory_space<vmem>>, %arg7: memref<1x128xf32, #tpu.memory_space<vmem>>, %arg8: memref<1x1xf32, #tpu.memory_space<vmem>>, %arg9: memref<2x1xf32, #tpu.memory_space<vmem>>, %arg10: memref<64x128xf32, #tpu.memory_space<vmem>>, %arg11: memref<64x128xf32, #tpu.memory_space<vmem>>) attributes {dimension_semantics = [], scalar_prefetch = 0 : i64, scratch_operands = 2 : i64, tpu.core_type = #tpu.core_type<tc>} {
    %c0 = arith.constant 0 : index
    %c0_0 = arith.constant 0 : index
    %0 = vector.load %arg0[%c0, %c0_0] : memref<64x16xf32, #tpu.memory_space<vmem>>, vector<64x16xf32>
    %c0_1 = arith.constant 0 : index
    %c0_2 = arith.constant 0 : index
    %1 = vector.load %arg1[%c0_1, %c0_2] : memref<16x128xf32, #tpu.memory_space<vmem>>, vector<16x128xf32>
    %cst = arith.constant dense<0.000000e+00> : vector<64x128xf32>
    %2 = tpu.matmul %0, %1, %cst {dimension_numbers = #tpu.dot_dimension_numbers<[1], [0], [0], [1], [0, 0, 1, 1], [], []>} : vector<64x16xf32>, vector<16x128xf32>, vector<64x128xf32> -> vector<64x128xf32>
    %c0_3 = arith.constant 0 : index
    %c0_4 = arith.constant 0 : index
    %3 = vector.load %arg3[%c0_3, %c0_4] : memref<1x128xf32, #tpu.memory_space<vmem>>, vector<1x128xf32>
    %4 = vector.broadcast %3 : vector<1x128xf32> to vector<64x128xf32>
    %5 = arith.addf %2, %4 : vector<64x128xf32>
    %c0_5 = arith.constant 0 : index
    %c0_6 = arith.constant 0 : index
    %6 = vector.load %arg11[%c0_5, %c0_6] : memref<64x128xf32, #tpu.memory_space<vmem>>, vector<64x128xf32>
    tpu.vector_store %arg11[%c0_5, %c0_6], %5 {strides = array<i32>} : memref<64x128xf32, #tpu.memory_space<vmem>>, vector<64x128xf32>,
    %c0_7 = arith.constant 0 : index
    %c0_8 = arith.constant 0 : index
    %7 = vector.load %arg2[%c0_7, %c0_8] : memref<128x128xf32, #tpu.memory_space<vmem>>, vector<128x128xf32>
    %cst_9 = arith.constant 0.000000e+00 : f32
    %8 = vector.broadcast %cst_9 : f32 to vector<8x128xf32>
    %cst_10 = arith.constant 0.000000e+00 : f32
    %9 = vector.broadcast %cst_10 : f32 to vector<8x128xf32>
    %c0_11 = arith.constant 0 : index
    %c0_12 = arith.constant 0 : index
    %10 = vector.load %arg11[%c0_11, %c0_12] : memref<64x128xf32, #tpu.memory_space<vmem>>, vector<8x128xf32>
    %cst_13 = arith.constant dense<0.000000e+00> : vector<8x128xf32>
    %11 = tpu.matmul %8, %7, %cst_13 {dimension_numbers = #tpu.dot_dimension_numbers<[1], [0], [0], [1], [0, 0, 1, 1], [], []>} : vector<8x128xf32>, vector<128x128xf32>, vector<8x128xf32> -> vector<8x128xf32>
    %12 = arith.addf %10, %11 : vector<8x128xf32>
    %13 = arith.negf %12 : vector<8x128xf32>
    %14 = math.exp %13 : vector<8x128xf32>
    %cst_14 = arith.constant 1.000000e+00 : f32
    %15 = vector.broadcast %cst_14 : f32 to vector<8x128xf32>
    %16 = arith.addf %15, %14 : vector<8x128xf32>
    %17 = arith.divf %15, %16 : vector<8x128xf32>
    %18 = math.tanh %12 : vector<8x128xf32>
    %c96_i32 = arith.constant 96 : i32
    %19 = tpu.dynamic_rotate %17 by %c96_i32 dim 1 : vector<8x128xf32>, i32 -> vector<8x128xf32>
    %c64_i32 = arith.constant 64 : i32
    %20 = tpu.dynamic_rotate %18 by %c64_i32 dim 1 : vector<8x128xf32>, i32 -> vector<8x128xf32>
    %c32_i32 = arith.constant 32 : i32
    %21 = tpu.dynamic_rotate %17 by %c32_i32 dim 1 : vector<8x128xf32>, i32 -> vector<8x128xf32>
    %22 = arith.mulf %19, %9 : vector<8x128xf32>
    %23 = arith.mulf %17, %20 : vector<8x128xf32>
    %24 = arith.addf %22, %23 : vector<8x128xf32>
    %25 = math.tanh %24 : vector<8x128xf32>
    %26 = arith.mulf %21, %25 : vector<8x128xf32>
    %c0_15 = arith.constant 0 : index
    %c0_16 = arith.constant 0 : index
    %27 = vector.load %arg10[%c0_15, %c0_16] : memref<64x128xf32, #tpu.memory_space<vmem>>, vector<8x128xf32>
    tpu.vector_store %arg10[%c0_15, %c0_16], %26 {strides = array<i32>} : memref<64x128xf32, #tpu.memory_space<vmem>>, vector<8x128xf32>,
    %c8 = arith.constant 8 : index
    %c0_17 = arith.constant 0 : index
    %28 = vector.load %arg11[%c8, %c0_17] : memref<64x128xf32, #tpu.memory_space<vmem>>, vector<8x128xf32>
    %cst_18 = arith.constant dense<0.000000e+00> : vector<8x128xf32>
    %29 = tpu.matmul %26, %7, %cst_18 {dimension_numbers = #tpu.dot_dimension_numbers<[1], [0], [0], [1], [0, 0, 1, 1], [], []>} : vector<8x128xf32>, vector<128x128xf32>, vector<8x128xf32> -> vector<8x128xf32>
    %30 = arith.addf %28, %29 : vector<8x128xf32>
    %31 = arith.negf %30 : vector<8x128xf32>
    %32 = math.exp %31 : vector<8x128xf32>
    %cst_19 = arith.constant 1.000000e+00 : f32
    %33 = vector.broadcast %cst_19 : f32 to vector<8x128xf32>
    %34 = arith.addf %33, %32 : vector<8x128xf32>
    %35 = arith.divf %33, %34 : vector<8x128xf32>
    %36 = math.tanh %30 : vector<8x128xf32>
    %c96_i32_20 = arith.constant 96 : i32
    %37 = tpu.dynamic_rotate %35 by %c96_i32_20 dim 1 : vector<8x128xf32>, i32 -> vector<8x128xf32>
    %c64_i32_21 = arith.constant 64 : i32
    %38 = tpu.dynamic_rotate %36 by %c64_i32_21 dim 1 : vector<8x128xf32>, i32 -> vector<8x128xf32>
    %c32_i32_22 = arith.constant 32 : i32
    %39 = tpu.dynamic_rotate %35 by %c32_i32_22 dim 1 : vector<8x128xf32>, i32 -> vector<8x128xf32>
    %40 = arith.mulf %37, %24 : vector<8x128xf32>
    %41 = arith.mulf %35, %38 : vector<8x128xf32>
    %42 = arith.addf %40, %41 : vector<8x128xf32>
    %43 = math.tanh %42 : vector<8x128xf32>
    %44 = arith.mulf %39, %43 : vector<8x128xf32>
    %c8_23 = arith.constant 8 : index
    %c0_24 = arith.constant 0 : index
    %45 = vector.load %arg10[%c8_23, %c0_24] : memref<64x128xf32, #tpu.memory_space<vmem>>, vector<8x128xf32>
    tpu.vector_store %arg10[%c8_23, %c0_24], %44 {strides = array<i32>} : memref<64x128xf32, #tpu.memory_space<vmem>>, vector<8x128xf32>,
    %c16 = arith.constant 16 : index
    %c0_25 = arith.constant 0 : index
    %46 = vector.load %arg11[%c16, %c0_25] : memref<64x128xf32, #tpu.memory_space<vmem>>, vector<8x128xf32>
    %cst_26 = arith.constant dense<0.000000e+00> : vector<8x128xf32>
    %47 = tpu.matmul %44, %7, %cst_26 {dimension_numbers = #tpu.dot_dimension_numbers<[1], [0], [0], [1], [0, 0, 1, 1], [], []>} : vector<8x128xf32>, vector<128x128xf32>, vector<8x128xf32> -> vector<8x128xf32>
    %48 = arith.addf %46, %47 : vector<8x128xf32>
    %49 = arith.negf %48 : vector<8x128xf32>
    %50 = math.exp %49 : vector<8x128xf32>
    %cst_27 = arith.constant 1.000000e+00 : f32
    %51 = vector.broadcast %cst_27 : f32 to vector<8x128xf32>
    %52 = arith.addf %51, %50 : vector<8x128xf32>
    %53 = arith.divf %51, %52 : vector<8x128xf32>
    %54 = math.tanh %48 : vector<8x128xf32>
    %c96_i32_28 = arith.constant 96 : i32
    %55 = tpu.dynamic_rotate %53 by %c96_i32_28 dim 1 : vector<8x128xf32>, i32 -> vector<8x128xf32>
    %c64_i32_29 = arith.constant 64 : i32
    %56 = tpu.dynamic_rotate %54 by %c64_i32_29 dim 1 : vector<8x128xf32>, i32 -> vector<8x128xf32>
    %c32_i32_30 = arith.constant 32 : i32
    %57 = tpu.dynamic_rotate %53 by %c32_i32_30 dim 1 : vector<8x128xf32>, i32 -> vector<8x128xf32>
    %58 = arith.mulf %55, %42 : vector<8x128xf32>
    %59 = arith.mulf %53, %56 : vector<8x128xf32>
    %60 = arith.addf %58, %59 : vector<8x128xf32>
    %61 = math.tanh %60 : vector<8x128xf32>
    %62 = arith.mulf %57, %61 : vector<8x128xf32>
    %c16_31 = arith.constant 16 : index
    %c0_32 = arith.constant 0 : index
    %63 = vector.load %arg10[%c16_31, %c0_32] : memref<64x128xf32, #tpu.memory_space<vmem>>, vector<8x128xf32>
    tpu.vector_store %arg10[%c16_31, %c0_32], %62 {strides = array<i32>} : memref<64x128xf32, #tpu.memory_space<vmem>>, vector<8x128xf32>,
    %c24 = arith.constant 24 : index
    %c0_33 = arith.constant 0 : index
    %64 = vector.load %arg11[%c24, %c0_33] : memref<64x128xf32, #tpu.memory_space<vmem>>, vector<8x128xf32>
    %cst_34 = arith.constant dense<0.000000e+00> : vector<8x128xf32>
    %65 = tpu.matmul %62, %7, %cst_34 {dimension_numbers = #tpu.dot_dimension_numbers<[1], [0], [0], [1], [0, 0, 1, 1], [], []>} : vector<8x128xf32>, vector<128x128xf32>, vector<8x128xf32> -> vector<8x128xf32>
    %66 = arith.addf %64, %65 : vector<8x128xf32>
    %67 = arith.negf %66 : vector<8x128xf32>
    %68 = math.exp %67 : vector<8x128xf32>
    %cst_35 = arith.constant 1.000000e+00 : f32
    %69 = vector.broadcast %cst_35 : f32 to vector<8x128xf32>
    %70 = arith.addf %69, %68 : vector<8x128xf32>
    %71 = arith.divf %69, %70 : vector<8x128xf32>
    %72 = math.tanh %66 : vector<8x128xf32>
    %c96_i32_36 = arith.constant 96 : i32
    %73 = tpu.dynamic_rotate %71 by %c96_i32_36 dim 1 : vector<8x128xf32>, i32 -> vector<8x128xf32>
    %c64_i32_37 = arith.constant 64 : i32
    %74 = tpu.dynamic_rotate %72 by %c64_i32_37 dim 1 : vector<8x128xf32>, i32 -> vector<8x128xf32>
    %c32_i32_38 = arith.constant 32 : i32
    %75 = tpu.dynamic_rotate %71 by %c32_i32_38 dim 1 : vector<8x128xf32>, i32 -> vector<8x128xf32>
    %76 = arith.mulf %73, %60 : vector<8x128xf32>
    %77 = arith.mulf %71, %74 : vector<8x128xf32>
    %78 = arith.addf %76, %77 : vector<8x128xf32>
    %79 = math.tanh %78 : vector<8x128xf32>
    %80 = arith.mulf %75, %79 : vector<8x128xf32>
    %c24_39 = arith.constant 24 : index
    %c0_40 = arith.constant 0 : index
    %81 = vector.load %arg10[%c24_39, %c0_40] : memref<64x128xf32, #tpu.memory_space<vmem>>, vector<8x128xf32>
    tpu.vector_store %arg10[%c24_39, %c0_40], %80 {strides = array<i32>} : memref<64x128xf32, #tpu.memory_space<vmem>>, vector<8x128xf32>,
    %c32 = arith.constant 32 : index
    %c0_41 = arith.constant 0 : index
    %82 = vector.load %arg11[%c32, %c0_41] : memref<64x128xf32, #tpu.memory_space<vmem>>, vector<8x128xf32>
    %cst_42 = arith.constant dense<0.000000e+00> : vector<8x128xf32>
    %83 = tpu.matmul %80, %7, %cst_42 {dimension_numbers = #tpu.dot_dimension_numbers<[1], [0], [0], [1], [0, 0, 1, 1], [], []>} : vector<8x128xf32>, vector<128x128xf32>, vector<8x128xf32> -> vector<8x128xf32>
    %84 = arith.addf %82, %83 : vector<8x128xf32>
    %85 = arith.negf %84 : vector<8x128xf32>
    %86 = math.exp %85 : vector<8x128xf32>
    %cst_43 = arith.constant 1.000000e+00 : f32
    %87 = vector.broadcast %cst_43 : f32 to vector<8x128xf32>
    %88 = arith.addf %87, %86 : vector<8x128xf32>
    %89 = arith.divf %87, %88 : vector<8x128xf32>
    %90 = math.tanh %84 : vector<8x128xf32>
    %c96_i32_44 = arith.constant 96 : i32
    %91 = tpu.dynamic_rotate %89 by %c96_i32_44 dim 1 : vector<8x128xf32>, i32 -> vector<8x128xf32>
    %c64_i32_45 = arith.constant 64 : i32
    %92 = tpu.dynamic_rotate %90 by %c64_i32_45 dim 1 : vector<8x128xf32>, i32 -> vector<8x128xf32>
    %c32_i32_46 = arith.constant 32 : i32
    %93 = tpu.dynamic_rotate %89 by %c32_i32_46 dim 1 : vector<8x128xf32>, i32 -> vector<8x128xf32>
    %94 = arith.mulf %91, %78 : vector<8x128xf32>
    %95 = arith.mulf %89, %92 : vector<8x128xf32>
    %96 = arith.addf %94, %95 : vector<8x128xf32>
    %97 = math.tanh %96 : vector<8x128xf32>
    %98 = arith.mulf %93, %97 : vector<8x128xf32>
    %c32_47 = arith.constant 32 : index
    %c0_48 = arith.constant 0 : index
    %99 = vector.load %arg10[%c32_47, %c0_48] : memref<64x128xf32, #tpu.memory_space<vmem>>, vector<8x128xf32>
    tpu.vector_store %arg10[%c32_47, %c0_48], %98 {strides = array<i32>} : memref<64x128xf32, #tpu.memory_space<vmem>>, vector<8x128xf32>,
    %c40 = arith.constant 40 : index
    %c0_49 = arith.constant 0 : index
    %100 = vector.load %arg11[%c40, %c0_49] : memref<64x128xf32, #tpu.memory_space<vmem>>, vector<8x128xf32>
    %cst_50 = arith.constant dense<0.000000e+00> : vector<8x128xf32>
    %101 = tpu.matmul %98, %7, %cst_50 {dimension_numbers = #tpu.dot_dimension_numbers<[1], [0], [0], [1], [0, 0, 1, 1], [], []>} : vector<8x128xf32>, vector<128x128xf32>, vector<8x128xf32> -> vector<8x128xf32>
    %102 = arith.addf %100, %101 : vector<8x128xf32>
    %103 = arith.negf %102 : vector<8x128xf32>
    %104 = math.exp %103 : vector<8x128xf32>
    %cst_51 = arith.constant 1.000000e+00 : f32
    %105 = vector.broadcast %cst_51 : f32 to vector<8x128xf32>
    %106 = arith.addf %105, %104 : vector<8x128xf32>
    %107 = arith.divf %105, %106 : vector<8x128xf32>
    %108 = math.tanh %102 : vector<8x128xf32>
    %c96_i32_52 = arith.constant 96 : i32
    %109 = tpu.dynamic_rotate %107 by %c96_i32_52 dim 1 : vector<8x128xf32>, i32 -> vector<8x128xf32>
    %c64_i32_53 = arith.constant 64 : i32
    %110 = tpu.dynamic_rotate %108 by %c64_i32_53 dim 1 : vector<8x128xf32>, i32 -> vector<8x128xf32>
    %c32_i32_54 = arith.constant 32 : i32
    %111 = tpu.dynamic_rotate %107 by %c32_i32_54 dim 1 : vector<8x128xf32>, i32 -> vector<8x128xf32>
    %112 = arith.mulf %109, %96 : vector<8x128xf32>
    %113 = arith.mulf %107, %110 : vector<8x128xf32>
    %114 = arith.addf %112, %113 : vector<8x128xf32>
    %115 = math.tanh %114 : vector<8x128xf32>
    %116 = arith.mulf %111, %115 : vector<8x128xf32>
    %c40_55 = arith.constant 40 : index
    %c0_56 = arith.constant 0 : index
    %117 = vector.load %arg10[%c40_55, %c0_56] : memref<64x128xf32, #tpu.memory_space<vmem>>, vector<8x128xf32>
    tpu.vector_store %arg10[%c40_55, %c0_56], %116 {strides = array<i32>} : memref<64x128xf32, #tpu.memory_space<vmem>>, vector<8x128xf32>,
    %c48 = arith.constant 48 : index
    %c0_57 = arith.constant 0 : index
    %118 = vector.load %arg11[%c48, %c0_57] : memref<64x128xf32, #tpu.memory_space<vmem>>, vector<8x128xf32>
    %cst_58 = arith.constant dense<0.000000e+00> : vector<8x128xf32>
    %119 = tpu.matmul %116, %7, %cst_58 {dimension_numbers = #tpu.dot_dimension_numbers<[1], [0], [0], [1], [0, 0, 1, 1], [], []>} : vector<8x128xf32>, vector<128x128xf32>, vector<8x128xf32> -> vector<8x128xf32>
    %120 = arith.addf %118, %119 : vector<8x128xf32>
    %121 = arith.negf %120 : vector<8x128xf32>
    %122 = math.exp %121 : vector<8x128xf32>
    %cst_59 = arith.constant 1.000000e+00 : f32
    %123 = vector.broadcast %cst_59 : f32 to vector<8x128xf32>
    %124 = arith.addf %123, %122 : vector<8x128xf32>
    %125 = arith.divf %123, %124 : vector<8x128xf32>
    %126 = math.tanh %120 : vector<8x128xf32>
    %c96_i32_60 = arith.constant 96 : i32
    %127 = tpu.dynamic_rotate %125 by %c96_i32_60 dim 1 : vector<8x128xf32>, i32 -> vector<8x128xf32>
    %c64_i32_61 = arith.constant 64 : i32
    %128 = tpu.dynamic_rotate %126 by %c64_i32_61 dim 1 : vector<8x128xf32>, i32 -> vector<8x128xf32>
    %c32_i32_62 = arith.constant 32 : i32
    %129 = tpu.dynamic_rotate %125 by %c32_i32_62 dim 1 : vector<8x128xf32>, i32 -> vector<8x128xf32>
    %130 = arith.mulf %127, %114 : vector<8x128xf32>
    %131 = arith.mulf %125, %128 : vector<8x128xf32>
    %132 = arith.addf %130, %131 : vector<8x128xf32>
    %133 = math.tanh %132 : vector<8x128xf32>
    %134 = arith.mulf %129, %133 : vector<8x128xf32>
    %c48_63 = arith.constant 48 : index
    %c0_64 = arith.constant 0 : index
    %135 = vector.load %arg10[%c48_63, %c0_64] : memref<64x128xf32, #tpu.memory_space<vmem>>, vector<8x128xf32>
    tpu.vector_store %arg10[%c48_63, %c0_64], %134 {strides = array<i32>} : memref<64x128xf32, #tpu.memory_space<vmem>>, vector<8x128xf32>,
    %c56 = arith.constant 56 : index
    %c0_65 = arith.constant 0 : index
    %136 = vector.load %arg11[%c56, %c0_65] : memref<64x128xf32, #tpu.memory_space<vmem>>, vector<8x128xf32>
    %cst_66 = arith.constant dense<0.000000e+00> : vector<8x128xf32>
    %137 = tpu.matmul %134, %7, %cst_66 {dimension_numbers = #tpu.dot_dimension_numbers<[1], [0], [0], [1], [0, 0, 1, 1], [], []>} : vector<8x128xf32>, vector<128x128xf32>, vector<8x128xf32> -> vector<8x128xf32>
    %138 = arith.addf %136, %137 : vector<8x128xf32>
    %139 = arith.negf %138 : vector<8x128xf32>
    %140 = math.exp %139 : vector<8x128xf32>
    %cst_67 = arith.constant 1.000000e+00 : f32
    %141 = vector.broadcast %cst_67 : f32 to vector<8x128xf32>
    %142 = arith.addf %141, %140 : vector<8x128xf32>
    %143 = arith.divf %141, %142 : vector<8x128xf32>
    %144 = math.tanh %138 : vector<8x128xf32>
    %c96_i32_68 = arith.constant 96 : i32
    %145 = tpu.dynamic_rotate %143 by %c96_i32_68 dim 1 : vector<8x128xf32>, i32 -> vector<8x128xf32>
    %c64_i32_69 = arith.constant 64 : i32
    %146 = tpu.dynamic_rotate %144 by %c64_i32_69 dim 1 : vector<8x128xf32>, i32 -> vector<8x128xf32>
    %c32_i32_70 = arith.constant 32 : i32
    %147 = tpu.dynamic_rotate %143 by %c32_i32_70 dim 1 : vector<8x128xf32>, i32 -> vector<8x128xf32>
    %148 = arith.mulf %145, %132 : vector<8x128xf32>
    %149 = arith.mulf %143, %146 : vector<8x128xf32>
    %150 = arith.addf %148, %149 : vector<8x128xf32>
    %151 = math.tanh %150 : vector<8x128xf32>
    %152 = arith.mulf %147, %151 : vector<8x128xf32>
    %c56_71 = arith.constant 56 : index
    %c0_72 = arith.constant 0 : index
    %153 = vector.load %arg10[%c56_71, %c0_72] : memref<64x128xf32, #tpu.memory_space<vmem>>, vector<8x128xf32>
    tpu.vector_store %arg10[%c56_71, %c0_72], %152 {strides = array<i32>} : memref<64x128xf32, #tpu.memory_space<vmem>>, vector<8x128xf32>,
    %c0_73 = arith.constant 0 : index
    %c0_74 = arith.constant 0 : index
    %154 = vector.load %arg10[%c0_73, %c0_74] : memref<64x128xf32, #tpu.memory_space<vmem>>, vector<64x128xf32>
    %c0_75 = arith.constant 0 : index
    %c0_76 = arith.constant 0 : index
    %155 = vector.load %arg4[%c0_75, %c0_76] : memref<128x128xf32, #tpu.memory_space<vmem>>, vector<128x128xf32>
    %cst_77 = arith.constant dense<0.000000e+00> : vector<64x128xf32>
    %156 = tpu.matmul %154, %155, %cst_77 {dimension_numbers = #tpu.dot_dimension_numbers<[1], [0], [0], [1], [0, 0, 1, 1], [], []>} : vector<64x128xf32>, vector<128x128xf32>, vector<64x128xf32> -> vector<64x128xf32>
    %c0_78 = arith.constant 0 : index
    %c0_79 = arith.constant 0 : index
    %157 = vector.load %arg6[%c0_78, %c0_79] : memref<1x128xf32, #tpu.memory_space<vmem>>, vector<1x128xf32>
    %158 = vector.broadcast %157 : vector<1x128xf32> to vector<64x128xf32>
    %159 = arith.addf %156, %158 : vector<64x128xf32>
    %c0_80 = arith.constant 0 : index
    %c0_81 = arith.constant 0 : index
    %160 = vector.load %arg11[%c0_80, %c0_81] : memref<64x128xf32, #tpu.memory_space<vmem>>, vector<64x128xf32>
    tpu.vector_store %arg11[%c0_80, %c0_81], %159 {strides = array<i32>} : memref<64x128xf32, #tpu.memory_space<vmem>>, vector<64x128xf32>,
    %c0_82 = arith.constant 0 : index
    %c0_83 = arith.constant 0 : index
    %161 = vector.load %arg5[%c0_82, %c0_83] : memref<128x128xf32, #tpu.memory_space<vmem>>, vector<128x128xf32>
    %cst_84 = arith.constant 0.000000e+00 : f32
    %162 = vector.broadcast %cst_84 : f32 to vector<8x128xf32>
    %cst_85 = arith.constant 0.000000e+00 : f32
    %163 = vector.broadcast %cst_85 : f32 to vector<8x128xf32>
    %c0_86 = arith.constant 0 : index
    %c0_87 = arith.constant 0 : index
    %164 = vector.load %arg11[%c0_86, %c0_87] : memref<64x128xf32, #tpu.memory_space<vmem>>, vector<8x128xf32>
    %cst_88 = arith.constant dense<0.000000e+00> : vector<8x128xf32>
    %165 = tpu.matmul %162, %161, %cst_88 {dimension_numbers = #tpu.dot_dimension_numbers<[1], [0], [0], [1], [0, 0, 1, 1], [], []>} : vector<8x128xf32>, vector<128x128xf32>, vector<8x128xf32> -> vector<8x128xf32>
    %166 = arith.addf %164, %165 : vector<8x128xf32>
    %167 = arith.negf %166 : vector<8x128xf32>
    %168 = math.exp %167 : vector<8x128xf32>
    %cst_89 = arith.constant 1.000000e+00 : f32
    %169 = vector.broadcast %cst_89 : f32 to vector<8x128xf32>
    %170 = arith.addf %169, %168 : vector<8x128xf32>
    %171 = arith.divf %169, %170 : vector<8x128xf32>
    %172 = math.tanh %166 : vector<8x128xf32>
    %c96_i32_90 = arith.constant 96 : i32
    %173 = tpu.dynamic_rotate %171 by %c96_i32_90 dim 1 : vector<8x128xf32>, i32 -> vector<8x128xf32>
    %c64_i32_91 = arith.constant 64 : i32
    %174 = tpu.dynamic_rotate %172 by %c64_i32_91 dim 1 : vector<8x128xf32>, i32 -> vector<8x128xf32>
    %c32_i32_92 = arith.constant 32 : i32
    %175 = tpu.dynamic_rotate %171 by %c32_i32_92 dim 1 : vector<8x128xf32>, i32 -> vector<8x128xf32>
    %176 = arith.mulf %173, %163 : vector<8x128xf32>
    %177 = arith.mulf %171, %174 : vector<8x128xf32>
    %178 = arith.addf %176, %177 : vector<8x128xf32>
    %179 = math.tanh %178 : vector<8x128xf32>
    %180 = arith.mulf %175, %179 : vector<8x128xf32>
    %c8_93 = arith.constant 8 : index
    %c0_94 = arith.constant 0 : index
    %181 = vector.load %arg11[%c8_93, %c0_94] : memref<64x128xf32, #tpu.memory_space<vmem>>, vector<8x128xf32>
    %cst_95 = arith.constant dense<0.000000e+00> : vector<8x128xf32>
    %182 = tpu.matmul %180, %161, %cst_95 {dimension_numbers = #tpu.dot_dimension_numbers<[1], [0], [0], [1], [0, 0, 1, 1], [], []>} : vector<8x128xf32>, vector<128x128xf32>, vector<8x128xf32> -> vector<8x128xf32>
    %183 = arith.addf %181, %182 : vector<8x128xf32>
    %184 = arith.negf %183 : vector<8x128xf32>
    %185 = math.exp %184 : vector<8x128xf32>
    %cst_96 = arith.constant 1.000000e+00 : f32
    %186 = vector.broadcast %cst_96 : f32 to vector<8x128xf32>
    %187 = arith.addf %186, %185 : vector<8x128xf32>
    %188 = arith.divf %186, %187 : vector<8x128xf32>
    %189 = math.tanh %183 : vector<8x128xf32>
    %c96_i32_97 = arith.constant 96 : i32
    %190 = tpu.dynamic_rotate %188 by %c96_i32_97 dim 1 : vector<8x128xf32>, i32 -> vector<8x128xf32>
    %c64_i32_98 = arith.constant 64 : i32
    %191 = tpu.dynamic_rotate %189 by %c64_i32_98 dim 1 : vector<8x128xf32>, i32 -> vector<8x128xf32>
    %c32_i32_99 = arith.constant 32 : i32
    %192 = tpu.dynamic_rotate %188 by %c32_i32_99 dim 1 : vector<8x128xf32>, i32 -> vector<8x128xf32>
    %193 = arith.mulf %190, %178 : vector<8x128xf32>
    %194 = arith.mulf %188, %191 : vector<8x128xf32>
    %195 = arith.addf %193, %194 : vector<8x128xf32>
    %196 = math.tanh %195 : vector<8x128xf32>
    %197 = arith.mulf %192, %196 : vector<8x128xf32>
    %c16_100 = arith.constant 16 : index
    %c0_101 = arith.constant 0 : index
    %198 = vector.load %arg11[%c16_100, %c0_101] : memref<64x128xf32, #tpu.memory_space<vmem>>, vector<8x128xf32>
    %cst_102 = arith.constant dense<0.000000e+00> : vector<8x128xf32>
    %199 = tpu.matmul %197, %161, %cst_102 {dimension_numbers = #tpu.dot_dimension_numbers<[1], [0], [0], [1], [0, 0, 1, 1], [], []>} : vector<8x128xf32>, vector<128x128xf32>, vector<8x128xf32> -> vector<8x128xf32>
    %200 = arith.addf %198, %199 : vector<8x128xf32>
    %201 = arith.negf %200 : vector<8x128xf32>
    %202 = math.exp %201 : vector<8x128xf32>
    %cst_103 = arith.constant 1.000000e+00 : f32
    %203 = vector.broadcast %cst_103 : f32 to vector<8x128xf32>
    %204 = arith.addf %203, %202 : vector<8x128xf32>
    %205 = arith.divf %203, %204 : vector<8x128xf32>
    %206 = math.tanh %200 : vector<8x128xf32>
    %c96_i32_104 = arith.constant 96 : i32
    %207 = tpu.dynamic_rotate %205 by %c96_i32_104 dim 1 : vector<8x128xf32>, i32 -> vector<8x128xf32>
    %c64_i32_105 = arith.constant 64 : i32
    %208 = tpu.dynamic_rotate %206 by %c64_i32_105 dim 1 : vector<8x128xf32>, i32 -> vector<8x128xf32>
    %c32_i32_106 = arith.constant 32 : i32
    %209 = tpu.dynamic_rotate %205 by %c32_i32_106 dim 1 : vector<8x128xf32>, i32 -> vector<8x128xf32>
    %210 = arith.mulf %207, %195 : vector<8x128xf32>
    %211 = arith.mulf %205, %208 : vector<8x128xf32>
    %212 = arith.addf %210, %211 : vector<8x128xf32>
    %213 = math.tanh %212 : vector<8x128xf32>
    %214 = arith.mulf %209, %213 : vector<8x128xf32>
    %c24_107 = arith.constant 24 : index
    %c0_108 = arith.constant 0 : index
    %215 = vector.load %arg11[%c24_107, %c0_108] : memref<64x128xf32, #tpu.memory_space<vmem>>, vector<8x128xf32>
    %cst_109 = arith.constant dense<0.000000e+00> : vector<8x128xf32>
    %216 = tpu.matmul %214, %161, %cst_109 {dimension_numbers = #tpu.dot_dimension_numbers<[1], [0], [0], [1], [0, 0, 1, 1], [], []>} : vector<8x128xf32>, vector<128x128xf32>, vector<8x128xf32> -> vector<8x128xf32>
    %217 = arith.addf %215, %216 : vector<8x128xf32>
    %218 = arith.negf %217 : vector<8x128xf32>
    %219 = math.exp %218 : vector<8x128xf32>
    %cst_110 = arith.constant 1.000000e+00 : f32
    %220 = vector.broadcast %cst_110 : f32 to vector<8x128xf32>
    %221 = arith.addf %220, %219 : vector<8x128xf32>
    %222 = arith.divf %220, %221 : vector<8x128xf32>
    %223 = math.tanh %217 : vector<8x128xf32>
    %c96_i32_111 = arith.constant 96 : i32
    %224 = tpu.dynamic_rotate %222 by %c96_i32_111 dim 1 : vector<8x128xf32>, i32 -> vector<8x128xf32>
    %c64_i32_112 = arith.constant 64 : i32
    %225 = tpu.dynamic_rotate %223 by %c64_i32_112 dim 1 : vector<8x128xf32>, i32 -> vector<8x128xf32>
    %c32_i32_113 = arith.constant 32 : i32
    %226 = tpu.dynamic_rotate %222 by %c32_i32_113 dim 1 : vector<8x128xf32>, i32 -> vector<8x128xf32>
    %227 = arith.mulf %224, %212 : vector<8x128xf32>
    %228 = arith.mulf %222, %225 : vector<8x128xf32>
    %229 = arith.addf %227, %228 : vector<8x128xf32>
    %230 = math.tanh %229 : vector<8x128xf32>
    %231 = arith.mulf %226, %230 : vector<8x128xf32>
    %c32_114 = arith.constant 32 : index
    %c0_115 = arith.constant 0 : index
    %232 = vector.load %arg11[%c32_114, %c0_115] : memref<64x128xf32, #tpu.memory_space<vmem>>, vector<8x128xf32>
    %cst_116 = arith.constant dense<0.000000e+00> : vector<8x128xf32>
    %233 = tpu.matmul %231, %161, %cst_116 {dimension_numbers = #tpu.dot_dimension_numbers<[1], [0], [0], [1], [0, 0, 1, 1], [], []>} : vector<8x128xf32>, vector<128x128xf32>, vector<8x128xf32> -> vector<8x128xf32>
    %234 = arith.addf %232, %233 : vector<8x128xf32>
    %235 = arith.negf %234 : vector<8x128xf32>
    %236 = math.exp %235 : vector<8x128xf32>
    %cst_117 = arith.constant 1.000000e+00 : f32
    %237 = vector.broadcast %cst_117 : f32 to vector<8x128xf32>
    %238 = arith.addf %237, %236 : vector<8x128xf32>
    %239 = arith.divf %237, %238 : vector<8x128xf32>
    %240 = math.tanh %234 : vector<8x128xf32>
    %c96_i32_118 = arith.constant 96 : i32
    %241 = tpu.dynamic_rotate %239 by %c96_i32_118 dim 1 : vector<8x128xf32>, i32 -> vector<8x128xf32>
    %c64_i32_119 = arith.constant 64 : i32
    %242 = tpu.dynamic_rotate %240 by %c64_i32_119 dim 1 : vector<8x128xf32>, i32 -> vector<8x128xf32>
    %c32_i32_120 = arith.constant 32 : i32
    %243 = tpu.dynamic_rotate %239 by %c32_i32_120 dim 1 : vector<8x128xf32>, i32 -> vector<8x128xf32>
    %244 = arith.mulf %241, %229 : vector<8x128xf32>
    %245 = arith.mulf %239, %242 : vector<8x128xf32>
    %246 = arith.addf %244, %245 : vector<8x128xf32>
    %247 = math.tanh %246 : vector<8x128xf32>
    %248 = arith.mulf %243, %247 : vector<8x128xf32>
    %c40_121 = arith.constant 40 : index
    %c0_122 = arith.constant 0 : index
    %249 = vector.load %arg11[%c40_121, %c0_122] : memref<64x128xf32, #tpu.memory_space<vmem>>, vector<8x128xf32>
    %cst_123 = arith.constant dense<0.000000e+00> : vector<8x128xf32>
    %250 = tpu.matmul %248, %161, %cst_123 {dimension_numbers = #tpu.dot_dimension_numbers<[1], [0], [0], [1], [0, 0, 1, 1], [], []>} : vector<8x128xf32>, vector<128x128xf32>, vector<8x128xf32> -> vector<8x128xf32>
    %251 = arith.addf %249, %250 : vector<8x128xf32>
    %252 = arith.negf %251 : vector<8x128xf32>
    %253 = math.exp %252 : vector<8x128xf32>
    %cst_124 = arith.constant 1.000000e+00 : f32
    %254 = vector.broadcast %cst_124 : f32 to vector<8x128xf32>
    %255 = arith.addf %254, %253 : vector<8x128xf32>
    %256 = arith.divf %254, %255 : vector<8x128xf32>
    %257 = math.tanh %251 : vector<8x128xf32>
    %c96_i32_125 = arith.constant 96 : i32
    %258 = tpu.dynamic_rotate %256 by %c96_i32_125 dim 1 : vector<8x128xf32>, i32 -> vector<8x128xf32>
    %c64_i32_126 = arith.constant 64 : i32
    %259 = tpu.dynamic_rotate %257 by %c64_i32_126 dim 1 : vector<8x128xf32>, i32 -> vector<8x128xf32>
    %c32_i32_127 = arith.constant 32 : i32
    %260 = tpu.dynamic_rotate %256 by %c32_i32_127 dim 1 : vector<8x128xf32>, i32 -> vector<8x128xf32>
    %261 = arith.mulf %258, %246 : vector<8x128xf32>
    %262 = arith.mulf %256, %259 : vector<8x128xf32>
    %263 = arith.addf %261, %262 : vector<8x128xf32>
    %264 = math.tanh %263 : vector<8x128xf32>
    %265 = arith.mulf %260, %264 : vector<8x128xf32>
    %c48_128 = arith.constant 48 : index
    %c0_129 = arith.constant 0 : index
    %266 = vector.load %arg11[%c48_128, %c0_129] : memref<64x128xf32, #tpu.memory_space<vmem>>, vector<8x128xf32>
    %cst_130 = arith.constant dense<0.000000e+00> : vector<8x128xf32>
    %267 = tpu.matmul %265, %161, %cst_130 {dimension_numbers = #tpu.dot_dimension_numbers<[1], [0], [0], [1], [0, 0, 1, 1], [], []>} : vector<8x128xf32>, vector<128x128xf32>, vector<8x128xf32> -> vector<8x128xf32>
    %268 = arith.addf %266, %267 : vector<8x128xf32>
    %269 = arith.negf %268 : vector<8x128xf32>
    %270 = math.exp %269 : vector<8x128xf32>
    %cst_131 = arith.constant 1.000000e+00 : f32
    %271 = vector.broadcast %cst_131 : f32 to vector<8x128xf32>
    %272 = arith.addf %271, %270 : vector<8x128xf32>
    %273 = arith.divf %271, %272 : vector<8x128xf32>
    %274 = math.tanh %268 : vector<8x128xf32>
    %c96_i32_132 = arith.constant 96 : i32
    %275 = tpu.dynamic_rotate %273 by %c96_i32_132 dim 1 : vector<8x128xf32>, i32 -> vector<8x128xf32>
    %c64_i32_133 = arith.constant 64 : i32
    %276 = tpu.dynamic_rotate %274 by %c64_i32_133 dim 1 : vector<8x128xf32>, i32 -> vector<8x128xf32>
    %c32_i32_134 = arith.constant 32 : i32
    %277 = tpu.dynamic_rotate %273 by %c32_i32_134 dim 1 : vector<8x128xf32>, i32 -> vector<8x128xf32>
    %278 = arith.mulf %275, %263 : vector<8x128xf32>
    %279 = arith.mulf %273, %276 : vector<8x128xf32>
    %280 = arith.addf %278, %279 : vector<8x128xf32>
    %281 = math.tanh %280 : vector<8x128xf32>
    %282 = arith.mulf %277, %281 : vector<8x128xf32>
    %c56_135 = arith.constant 56 : index
    %c0_136 = arith.constant 0 : index
    %283 = vector.load %arg11[%c56_135, %c0_136] : memref<64x128xf32, #tpu.memory_space<vmem>>, vector<8x128xf32>
    %cst_137 = arith.constant dense<0.000000e+00> : vector<8x128xf32>
    %284 = tpu.matmul %282, %161, %cst_137 {dimension_numbers = #tpu.dot_dimension_numbers<[1], [0], [0], [1], [0, 0, 1, 1], [], []>} : vector<8x128xf32>, vector<128x128xf32>, vector<8x128xf32> -> vector<8x128xf32>
    %285 = arith.addf %283, %284 : vector<8x128xf32>
    %286 = arith.negf %285 : vector<8x128xf32>
    %287 = math.exp %286 : vector<8x128xf32>
    %cst_138 = arith.constant 1.000000e+00 : f32
    %288 = vector.broadcast %cst_138 : f32 to vector<8x128xf32>
    %289 = arith.addf %288, %287 : vector<8x128xf32>
    %290 = arith.divf %288, %289 : vector<8x128xf32>
    %291 = math.tanh %285 : vector<8x128xf32>
    %c96_i32_139 = arith.constant 96 : i32
    %292 = tpu.dynamic_rotate %290 by %c96_i32_139 dim 1 : vector<8x128xf32>, i32 -> vector<8x128xf32>
    %c64_i32_140 = arith.constant 64 : i32
    %293 = tpu.dynamic_rotate %291 by %c64_i32_140 dim 1 : vector<8x128xf32>, i32 -> vector<8x128xf32>
    %c32_i32_141 = arith.constant 32 : i32
    %294 = tpu.dynamic_rotate %290 by %c32_i32_141 dim 1 : vector<8x128xf32>, i32 -> vector<8x128xf32>
    %295 = arith.mulf %292, %280 : vector<8x128xf32>
    %296 = arith.mulf %290, %293 : vector<8x128xf32>
    %297 = arith.addf %295, %296 : vector<8x128xf32>
    %298 = math.tanh %297 : vector<8x128xf32>
    %299 = arith.mulf %294, %298 : vector<8x128xf32>
    %300 = vector.extract_strided_slice %231 {offsets = [1, 0], sizes = [1, 128], strides = [1, 1]} : vector<8x128xf32> to vector<1x128xf32>
    %301 = vector.extract_strided_slice %299 {offsets = [1, 0], sizes = [1, 128], strides = [1, 1]} : vector<8x128xf32> to vector<1x128xf32>
    %302 = tpu.concatenate %300, %301 in 0 : vector<1x128xf32>, vector<1x128xf32> -> vector<2x128xf32>
    %c0_142 = arith.constant 0 : index
    %c0_143 = arith.constant 0 : index
    %303 = vector.load %arg7[%c0_142, %c0_143] : memref<1x128xf32, #tpu.memory_space<vmem>>, vector<1x128xf32>
    %304 = vector.broadcast %303 : vector<1x128xf32> to vector<2x128xf32>
    %305 = arith.mulf %302, %304 : vector<2x128xf32>
    %cst_144 = arith.constant dense<0.000000e+00> : vector<2xf32>
    %306 = vector.multi_reduction <add>, %305, %cst_144 [1] : vector<2x128xf32> to vector<2xf32>
    %307 = vector.shape_cast %306 : vector<2xf32> to vector<2x1xf32>
    %c0_145 = arith.constant 0 : index
    %c0_146 = arith.constant 0 : index
    %308 = vector.load %arg8[%c0_145, %c0_146] : memref<1x1xf32, #tpu.memory_space<vmem>>, vector<1x1xf32>
    %309 = vector.broadcast %308 : vector<1x1xf32> to vector<2x1xf32>
    %310 = arith.addf %307, %309 : vector<2x1xf32>
    %c0_147 = arith.constant 0 : index
    %c0_148 = arith.constant 0 : index
    %311 = vector.load %arg9[%c0_147, %c0_148] : memref<2x1xf32, #tpu.memory_space<vmem>>, vector<2x1xf32>
    tpu.vector_store %arg9[%c0_147, %c0_148], %310 {strides = array<i32>} : memref<2x1xf32, #tpu.memory_space<vmem>>, vector<2x1xf32>,
    return
  }
}

</mosaic_0001>

<llo_original>
// kernel: tpu_custom_call.1
$region0: #{tpu_custom_call.1}
  #allocation0 [shape = 'u32[]', space=smem, size = 0x4, offset = 0x4, fixed_abs, tag = 'smem constant byte address 0x4 - core index']
  #allocation1 [shape = 'u32[144,128]{1,0:T(1,128)}', space=vmem, size = 0x12000, scoped, tag = 'internal scratch']
  #allocation2 [shape = 'f32[64,128]{1,0:T(8,128)}', space=vmem, size = 0x8000, scoped, tag = 'scratch operand']
  #allocation3 [shape = 'f32[64,128]{1,0:T(8,128)}', space=vmem, size = 0x8000, scoped, tag = 'scratch operand']
  #allocation4 [shape = 'f32[1,1]{1,0:T(1,128)S(1)}', space=vmem, size = 0x200, scoped, tag = 'scoped memory for tpu_custom_call.1']
  %s0 = inlined_call_operand.vmem [shape: f32[64,16], index: 0, kind: input, shape index: {}]
  %s1 = inlined_call_operand.vmem [shape: f32[16,128], index: 1, kind: input, shape index: {}]
  %s2 = inlined_call_operand.hbm [shape: f32[128,128], index: 2, kind: input, shape index: {}]
  %s3 = inlined_call_operand.vmem [shape: f32[1,128], index: 3, kind: input, shape index: {}]
  %s4 = inlined_call_operand.hbm [shape: f32[128,128], index: 4, kind: input, shape index: {}]
  %s5 = inlined_call_operand.hbm [shape: f32[128,128], index: 5, kind: input, shape index: {}]
  %s6 = inlined_call_operand.vmem [shape: f32[1,128], index: 6, kind: input, shape index: {}]
  %s7 = inlined_call_operand.vmem [shape: f32[1,128], index: 7, kind: input, shape index: {}]
  %s8 = inlined_call_operand.<no memory space> [shape: f32[1,1], index: 8, kind: input, shape index: {}]
  %s9 = inlined_call_operand.vmem [shape: f32[2,1], index: 9, kind: output, shape index: {}]
  %s10 = sld [smem:[#allocation0]]
  $region58: #{tpu_custom_call.1} parent=0
    _
  %s12 = ssub.s32 1, %s10
  %s13 = scalar_select 0, %s12, %s10
  %v14 = vstv %s8
  %15 = vst [vmem:[#allocation4] sm:$0x1] %v14
  $region1: #{tpu_custom_call.1} parent=0
    #allocation5 [shape = 'u8[65536]{0}', space=vmem, size = 0x10000, scoped, tag = 'input window, operand 2, single buffered']
    #allocation6 [shape = 's32[1]{0}', space=sflag, size = 0x4, scoped, tag = 'scoped memory for tpu_custom_call.1']
    #allocation7 [shape = 'u8[65536]{0}', space=vmem, size = 0x10000, scoped, tag = 'input window, operand 4, single buffered']
    #allocation8 [shape = 's32[1]{0}', space=sflag, size = 0x4, scoped, tag = 'scoped memory for tpu_custom_call.1']
    #allocation9 [shape = 'u8[65536]{0}', space=vmem, size = 0x10000, scoped, tag = 'input window, operand 5, single buffered']
    %16 = vsyncpa [#allocation6], 0
    %17 = vsyncpa [#allocation8], 0
    // Predicated region
    $region2: #{tpu_custom_call.1} parent=1 // pred_check
      _
    $region3: #{tpu_custom_call.1} parent=1 // pred_check_branch
      %19 = sbr.rel (0) target = $region5
    $region4: #{tpu_custom_call.1} parent=1 // pred_region
      _
    $region5: #{tpu_custom_call.1} parent=1 // pred_fallthru
      _
    // Predicated region
    $region6: #{tpu_custom_call.1} parent=1 // pred_check
      _
    $region7: #{tpu_custom_call.1} parent=1 // pred_check_branch
      %21 = sbr.rel (0) target = $region9
    $region8: #{tpu_custom_call.1} parent=1 // pred_region
      _
    $region9: #{tpu_custom_call.1} parent=1 // pred_fallthru
      _
    // Predicated region
    $region10: #{tpu_custom_call.1} parent=1 // pred_check
      _
    $region11: #{tpu_custom_call.1} parent=1 // pred_check_branch
      %23 = sbr.rel (0) target = $region13
    $region12: #{tpu_custom_call.1} parent=1 // pred_region
      %s25 = ssub.s32 2048, 2048
      %26 = vsyncadd [#allocation6], %s25
      %s27 = sshll.u32 [#allocation5], 4
      %s28 = int_to_ptr.vmem [resolvable:$true] %s27
      %33 = dma.hbm_to_vmem [thread:$0]  %s2, 2048, %s28, [#allocation6], 128, 128, 8
    $region13: #{tpu_custom_call.1} parent=1 // pred_fallthru
      _
    // Predicated region
    $region14: #{tpu_custom_call.1} parent=1 // pred_check
      _
    $region15: #{tpu_custom_call.1} parent=1 // pred_check_branch
      %35 = sbr.rel (0) target = $region17
    $region16: #{tpu_custom_call.1} parent=1 // pred_region
      _
    $region17: #{tpu_custom_call.1} parent=1 // pred_fallthru
      _
    // Predicated region
    $region18: #{tpu_custom_call.1} parent=1 // pred_check
      _
    $region19: #{tpu_custom_call.1} parent=1 // pred_check_branch
      %37 = sbr.rel (0) target = $region21
    $region20: #{tpu_custom_call.1} parent=1 // pred_region
      %s39 = ssub.s32 2048, 2048
      %40 = vsyncadd [#allocation8], %s39
      %s41 = sshll.u32 [#allocation7], 4
      %s42 = int_to_ptr.vmem [resolvable:$true] %s41
      %47 = dma.hbm_to_vmem [thread:$0]  %s4, 2048, %s42, [#allocation8], 128, 128, 8
    $region21: #{tpu_custom_call.1} parent=1 // pred_fallthru
      _
    // Predicated region
    $region22: #{tpu_custom_call.1} parent=1 // pred_check
      _
    $region23: #{tpu_custom_call.1} parent=1 // pred_check_branch
      %49 = sbr.rel (0) target = $region25
    $region24: #{tpu_custom_call.1} parent=1 // pred_region
      %s51 = ssub.s32 2048, 2048
      %52 = vsyncadd [#allocation8], %s51
      %s53 = sshll.u32 [#allocation9], 4
      %s54 = int_to_ptr.vmem [resolvable:$true] %s53
      %59 = dma.hbm_to_vmem [thread:$0]  %s5, 2048, %s54, [#allocation8], 128, 128, 8
    $region25: #{tpu_custom_call.1} parent=1 // pred_fallthru
      _
    // Predicated region
    $region26: #{tpu_custom_call.1} parent=1 // pred_check
      _
    $region27: #{tpu_custom_call.1} parent=1 // pred_check_branch
      %61 = sbr.rel (0) target = $region29
    $region28: #{tpu_custom_call.1} parent=1 // pred_region
      _
    $region29: #{tpu_custom_call.1} parent=1 // pred_fallthru
      _
    // Predicated region
    $region30: #{tpu_custom_call.1} parent=1 // pred_check
      _
    $region31: #{tpu_custom_call.1} parent=1 // pred_check_branch
      %63 = sbr.rel (0) target = $region33
    $region32: #{tpu_custom_call.1} parent=1 // pred_region
      _
    $region33: #{tpu_custom_call.1} parent=1 // pred_fallthru
      _
    // Predicated region
    $region34: #{tpu_custom_call.1} parent=1 // pred_check
      _
    $region35: #{tpu_custom_call.1} parent=1 // pred_check_branch
      %65 = sbr.rel (0) target = $region37
    $region36: #{tpu_custom_call.1} parent=1 // pred_region
      _
    $region37: #{tpu_custom_call.1} parent=1 // pred_fallthru
      _
    // Predicated region
    $region38: #{tpu_custom_call.1} parent=1 // pred_check
      _
    $region39: #{tpu_custom_call.1} parent=1 // pred_check_branch
      %67 = sbr.rel (0) target = $region41
    $region40: #{tpu_custom_call.1} parent=1 // pred_region
      %68 = dma.done [#allocation6], 2048
    $region41: #{tpu_custom_call.1} parent=1 // pred_fallthru
      _
    // Predicated region
    $region42: #{tpu_custom_call.1} parent=1 // pred_check
      _
    $region43: #{tpu_custom_call.1} parent=1 // pred_check_branch
      %70 = sbr.rel (0) target = $region45
    $region44: #{tpu_custom_call.1} parent=1 // pred_region
      %71 = dma.done [#allocation8], 2048
    $region45: #{tpu_custom_call.1} parent=1 // pred_fallthru
      _
    // Predicated region
    $region46: #{tpu_custom_call.1} parent=1 // pred_check
      _
    $region47: #{tpu_custom_call.1} parent=1 // pred_check_branch
      %73 = sbr.rel (0) target = $region49
    $region48: #{tpu_custom_call.1} parent=1 // pred_region
      %74 = dma.done [#allocation8], 2048
    $region49: #{tpu_custom_call.1} parent=1 // pred_fallthru
      _
    %v75 = vld [vmem:[%s0] sm:$0xff]
    %v76 = vld [vmem:[%s0 + $0x8] sm:$0xff]
    %v77 = vld [vmem:[%s0 + $0x10] sm:$0xff]
    %v78 = vld [vmem:[%s0 + $0x18] sm:$0xff]
    %v79 = vld [vmem:[%s0 + $0x20] sm:$0xff]
    %v80 = vld [vmem:[%s0 + $0x28] sm:$0xff]
    %v81 = vld [vmem:[%s0 + $0x30] sm:$0xff]
    %v82 = vld [vmem:[%s0 + $0x38] sm:$0xff]
    %v83 = vld [vmem:[%s1] sm:$0xff]
    %v84 = vld [vmem:[%s1 + $0x8] sm:$0xff]
    %v85 = vld [vmem:[%s3] sm:$0x1]
    %v87 = vlaneseq
    %v88 = vshrl.u32 %v87, 7
    %v89 = vsub.s32 0, %v88
    %v90 = vrot.slane %v85, %v89
    %vm92 = vcmask 130048
    %v94 = vsel %vm92, %v75, 0
    %v97 = vsel %vm92, %v76, 0
    %v100 = vsel %vm92, %v77, 0
    %v103 = vsel %vm92, %v78, 0
    %v106 = vsel %vm92, %v79, 0
    %v109 = vsel %vm92, %v80, 0
    %v112 = vsel %vm92, %v81, 0
    %v115 = vsel %vm92, %v82, 0
    %117 = vmatprep.subr.mxu0 0.0
    %118 = vmatpush1.msra.mxu0 0.0
    %119 = vmatprep.subr.mxu0 0.0
    %120 = vmatpush1.msra.mxu0 0.0
    %121 = vmatprep.subr.mxu0 0.0
    %122 = vmatpush1.msra.mxu0 0.0
    %123 = vmatprep.subr.mxu0 0.0
    %124 = vmatpush1.msra.mxu0 0.0
    %125 = vmatprep.subr.mxu0 0.0
    %126 = vmatpush1.msra.mxu0 0.0
    %127 = vmatprep.subr.mxu0 0.0
    %128 = vmatpush1.msra.mxu0 0.0
    %129 = vmatprep.subr.mxu0 0.0
    %130 = vmatpush1.msra.mxu0 0.0
    %131 = vmatprep.subr.mxu0 0.0
    %132 = vmatpush1.msra.mxu0 0.0
    %133 = vmatprep.subr.mxu0 0.0
    %134 = vmatpush1.msra.mxu0 0.0
    %135 = vmatprep.subr.mxu0 0.0
    %136 = vmatpush1.msra.mxu0 0.0
    %137 = vmatprep.subr.mxu0 0.0
    %138 = vmatpush1.msra.mxu0 0.0
    %139 = vmatprep.subr.mxu0 0.0
    %140 = vmatpush1.msra.mxu0 0.0
    %141 = vmatprep.subr.mxu0 0.0
    %142 = vmatpush1.msra.mxu0 0.0
    %143 = vmatprep.subr.mxu0 0.0
    %144 = vmatpush1.msra.mxu0 0.0
    %145 = vmatprep.subr.mxu0 0.0
    %146 = vmatpush1.msra.mxu0 %v84
    %147 = vmatprep.subr.mxu0 0.0
    %148 = vmatpush1.msra.mxu0 %v83
    %149 = vmatprep.subr.mxu0 0.0
    %150 = vmatpush2.msra.mxu0 0.0
    %151 = vmatprep.subr.mxu0 0.0
    %152 = vmatpush2.msra.mxu0 0.0
    %153 = vmatprep.subr.mxu0 0.0
    %154 = vmatpush2.msra.mxu0 0.0
    %155 = vmatprep.subr.mxu0 0.0
    %156 = vmatpush2.msra.mxu0 0.0
    %157 = vmatprep.subr.mxu0 0.0
    %158 = vmatpush2.msra.mxu0 0.0
    %159 = vmatprep.subr.mxu0 0.0
    %160 = vmatpush2.msra.mxu0 0.0
    %161 = vmatprep.subr.mxu0 0.0
    %162 = vmatpush2.msra.mxu0 0.0
    %163 = vmatprep.subr.mxu0 0.0
    %164 = vmatpush2.msra.mxu0 0.0
    %165 = vmatprep.subr.mxu0 0.0
    %166 = vmatpush2.msra.mxu0 0.0
    %167 = vmatprep.subr.mxu0 0.0
    %168 = vmatpush2.msra.mxu0 0.0
    %169 = vmatprep.subr.mxu0 0.0
    %170 = vmatpush2.msra.mxu0 0.0
    %171 = vmatprep.subr.mxu0 0.0
    %172 = vmatpush2.msra.mxu0 0.0
    %173 = vmatprep.subr.mxu0 0.0
    %174 = vmatpush2.msra.mxu0 0.0
    %175 = vmatprep.subr.mxu0 0.0
    %176 = vmatpush2.msra.mxu0 0.0
    %177 = vmatprep.subr.mxu0 0.0
    %178 = vmatpush2.msra.mxu0 0.0
    %179 = vmatprep.subr.mxu0 0.0
    %180 = vmatpush2.msra.mxu0 0.0
    %181 = vmatprep.mubr.f32.mxu0 0.0
    %182 = vmatmul.mubr.f32.gmra.mxu0 %v94
    %v183 = vpop.f32.mrf.mxu0
    %v184 = vadd.f32 %v90, %v183
    %v185 = vpop.f32.mrf.mxu0
    %186 = vmatprep.mubr.f32.mxu0 0.0
    %187 = vmatmul.mubr.f32.gmra.mxu0 %v97
    %v188 = vpop.f32.mrf.mxu0
    %v189 = vadd.f32 %v90, %v188
    %v190 = vpop.f32.mrf.mxu0
    %191 = vmatprep.mubr.f32.mxu0 0.0
    %192 = vmatmul.mubr.f32.gmra.mxu0 %v100
    %v193 = vpop.f32.mrf.mxu0
    %v194 = vadd.f32 %v90, %v193
    %v195 = vpop.f32.mrf.mxu0
    %196 = vmatprep.mubr.f32.mxu0 0.0
    %197 = vmatmul.mubr.f32.gmra.mxu0 %v103
    %v198 = vpop.f32.mrf.mxu0
    %v199 = vadd.f32 %v90, %v198
    %v200 = vpop.f32.mrf.mxu0
    %201 = vmatprep.mubr.f32.mxu0 0.0
    %202 = vmatmul.mubr.f32.gmra.mxu0 %v106
    %v203 = vpop.f32.mrf.mxu0
    %v204 = vadd.f32 %v90, %v203
    %v205 = vpop.f32.mrf.mxu0
    %206 = vmatprep.mubr.f32.mxu0 0.0
    %207 = vmatmul.mubr.f32.gmra.mxu0 %v109
    %v208 = vpop.f32.mrf.mxu0
    %v209 = vadd.f32 %v90, %v208
    %v210 = vpop.f32.mrf.mxu0
    %211 = vmatprep.mubr.f32.mxu0 0.0
    %212 = vmatmul.mubr.f32.gmra.mxu0 %v112
    %v213 = vpop.f32.mrf.mxu0
    %v214 = vadd.f32 %v90, %v213
    %v215 = vpop.f32.mrf.mxu0
    %216 = vmatprep.mubr.f32.mxu0 0.0
    %217 = vmatmul.mubr.f32.gmra.mxu0 %v115
    %v218 = vpop.f32.mrf.mxu0
    %v219 = vadd.f32 %v90, %v218
    %v220 = vpop.f32.mrf.mxu0
    %221 = vdwg.mxu0
    %222 = vst [vmem:[#allocation3] sm:$0xff] %v184
    %223 = vst [vmem:[#allocation3 + $0x8] sm:$0xff] %v189
    %224 = vst [vmem:[#allocation3 + $0x10] sm:$0xff] %v194
    %225 = vst [vmem:[#allocation3 + $0x18] sm:$0xff] %v199
    %226 = vst [vmem:[#allocation3 + $0x20] sm:$0xff] %v204
    %227 = vst [vmem:[#allocation3 + $0x28] sm:$0xff] %v209
    %228 = vst [vmem:[#allocation3 + $0x30] sm:$0xff] %v214
    %229 = vst [vmem:[#allocation3 + $0x38] sm:$0xff] %v219
    %v230 = vld [vmem:[#allocation5] sm:$0xff]
    %v231 = vld [vmem:[#allocation5 + $0x8] sm:$0xff]
    %v232 = vld [vmem:[#allocation5 + $0x10] sm:$0xff]
    %v233 = vld [vmem:[#allocation5 + $0x18] sm:$0xff]
    %v234 = vld [vmem:[#allocation5 + $0x20] sm:$0xff]
    %v235 = vld [vmem:[#allocation5 + $0x28] sm:$0xff]
    %v236 = vld [vmem:[#allocation5 + $0x30] sm:$0xff]
    %v237 = vld [vmem:[#allocation5 + $0x38] sm:$0xff]
    %v238 = vld [vmem:[#allocation5 + $0x40] sm:$0xff]
    %v239 = vld [vmem:[#allocation5 + $0x48] sm:$0xff]
    %v240 = vld [vmem:[#allocation5 + $0x50] sm:$0xff]
    %v241 = vld [vmem:[#allocation5 + $0x58] sm:$0xff]
    %v242 = vld [vmem:[#allocation5 + $0x60] sm:$0xff]
    %v243 = vld [vmem:[#allocation5 + $0x68] sm:$0xff]
    %v244 = vld [vmem:[#allocation5 + $0x70] sm:$0xff]
    %v245 = vld [vmem:[#allocation5 + $0x78] sm:$0xff]
    %v246 = vld [vmem:[#allocation3] sm:$0xff]
    %247 = vmatprep.subr.mxu0 0.0
    %248 = vmatpush1.msra.mxu0 %v245
    %249 = vmatprep.subr.mxu0 0.0
    %250 = vmatpush1.msra.mxu0 %v244
    %251 = vmatprep.subr.mxu0 0.0
    %252 = vmatpush1.msra.mxu0 %v243
    %253 = vmatprep.subr.mxu0 0.0
    %254 = vmatpush1.msra.mxu0 %v242
    %255 = vmatprep.subr.mxu0 0.0
    %256 = vmatpush1.msra.mxu0 %v241
    %257 = vmatprep.subr.mxu0 0.0
    %258 = vmatpush1.msra.mxu0 %v240
    %259 = vmatprep.subr.mxu0 0.0
    %260 = vmatpush1.msra.mxu0 %v239
    %261 = vmatprep.subr.mxu0 0.0
    %262 = vmatpush1.msra.mxu0 %v238
    %263 = vmatprep.subr.mxu0 0.0
    %264 = vmatpush1.msra.mxu0 %v237
    %265 = vmatprep.subr.mxu0 0.0
    %266 = vmatpush1.msra.mxu0 %v236
    %267 = vmatprep.subr.mxu0 0.0
    %268 = vmatpush1.msra.mxu0 %v235
    %269 = vmatprep.subr.mxu0 0.0
    %270 = vmatpush1.msra.mxu0 %v234
    %271 = vmatprep.subr.mxu0 0.0
    %272 = vmatpush1.msra.mxu0 %v233
    %273 = vmatprep.subr.mxu0 0.0
    %274 = vmatpush1.msra.mxu0 %v232
    %275 = vmatprep.subr.mxu0 0.0
    %276 = vmatpush1.msra.mxu0 %v231
    %277 = vmatprep.subr.mxu0 0.0
    %278 = vmatpush1.msra.mxu0 %v230
    %279 = vmatprep.subr.mxu0 0.0
    %280 = vmatpush2.msra.mxu0 0.0
    %281 = vmatprep.subr.mxu0 0.0
    %282 = vmatpush2.msra.mxu0 0.0
    %283 = vmatprep.subr.mxu0 0.0
    %284 = vmatpush2.msra.mxu0 0.0
    %285 = vmatprep.subr.mxu0 0.0
    %286 = vmatpush2.msra.mxu0 0.0
    %287 = vmatprep.subr.mxu0 0.0
    %288 = vmatpush2.msra.mxu0 0.0
    %289 = vmatprep.subr.mxu0 0.0
    %290 = vmatpush2.msra.mxu0 0.0
    %291 = vmatprep.subr.mxu0 0.0
    %292 = vmatpush2.msra.mxu0 0.0
    %293 = vmatprep.subr.mxu0 0.0
    %294 = vmatpush2.msra.mxu0 0.0
    %295 = vmatprep.subr.mxu0 0.0
    %296 = vmatpush2.msra.mxu0 0.0
    %297 = vmatprep.subr.mxu0 0.0
    %298 = vmatpush2.msra.mxu0 0.0
    %299 = vmatprep.subr.mxu0 0.0
    %300 = vmatpush2.msra.mxu0 0.0
    %301 = vmatprep.subr.mxu0 0.0
    %302 = vmatpush2.msra.mxu0 0.0
    %303 = vmatprep.subr.mxu0 0.0
    %304 = vmatpush2.msra.mxu0 0.0
    %305 = vmatprep.subr.mxu0 0.0
    %306 = vmatpush2.msra.mxu0 0.0
    %307 = vmatprep.subr.mxu0 0.0
    %308 = vmatpush2.msra.mxu0 0.0
    %309 = vmatprep.subr.mxu0 0.0
    %310 = vmatpush2.msra.mxu0 0.0
    %311 = vmatprep.mubr.f32.mxu0 0.0
    %312 = vmatmul.mubr.f32.gmra.mxu0 0.0
    %v313 = vpop.f32.mrf.mxu0
    %v314 = vadd.f32 0.0, %v313
    %v315 = vpop.f32.mrf.mxu0
    %316 = vdwg.mxu0
    %v317 = vadd.f32 %v246, %v314
    %v318 = vxor.u32 %v317, 2147483648
    %v319 = vmul.f32 %v318, 1.442695
    %v320 = vpow.pop %v319
    %v321 = vadd.f32 %v320, 1.0
    %v322 = vrcp.pop %v321
    %v323 = vmul.f32 1.0, %v322
    %v324 = vtanh.pop %v317
    %325 = vrot.lane.b32.xlu0 %v323, 96
    %v326 = vpop.permute.xlu0 %325
    %327 = vrot.lane.b32.xlu0 %v324, 64
    %v328 = vpop.permute.xlu0 %327
    %329 = vrot.lane.b32.xlu0 %v323, 32
    %v330 = vpop.permute.xlu0 %329
    %v331 = vmul.f32 %v326, 0.0
    %v332 = vmul.f32 %v323, %v328
    %v333 = vadd.f32 %v331, %v332
    %v334 = vtanh.pop %v333
    %v335 = vmul.f32 %v330, %v334
    %336 = vst [vmem:[#allocation2] sm:$0xff] %v335
    %v337 = vld [vmem:[#allocation3 + $0x8] sm:$0xff]
    %338 = vmatprep.subr.mxu0 0.0
    %339 = vmatpush1.msra.mxu0 %v245
    %340 = vmatprep.subr.mxu0 0.0
    %341 = vmatpush1.msra.mxu0 %v244
    %342 = vmatprep.subr.mxu0 0.0
    %343 = vmatpush1.msra.mxu0 %v243
    %344 = vmatprep.subr.mxu0 0.0
    %345 = vmatpush1.msra.mxu0 %v242
    %346 = vmatprep.subr.mxu0 0.0
    %347 = vmatpush1.msra.mxu0 %v241
    %348 = vmatprep.subr.mxu0 0.0
    %349 = vmatpush1.msra.mxu0 %v240
    %350 = vmatprep.subr.mxu0 0.0
    %351 = vmatpush1.msra.mxu0 %v239
    %352 = vmatprep.subr.mxu0 0.0
    %353 = vmatpush1.msra.mxu0 %v238
    %354 = vmatprep.subr.mxu0 0.0
    %355 = vmatpush1.msra.mxu0 %v237
    %356 = vmatprep.subr.mxu0 0.0
    %357 = vmatpush1.msra.mxu0 %v236
    %358 = vmatprep.subr.mxu0 0.0
    %359 = vmatpush1.msra.mxu0 %v235
    %360 = vmatprep.subr.mxu0 0.0
    %361 = vmatpush1.msra.mxu0 %v234
    %362 = vmatprep.subr.mxu0 0.0
    %363 = vmatpush1.msra.mxu0 %v233
    %364 = vmatprep.subr.mxu0 0.0
    %365 = vmatpush1.msra.mxu0 %v232
    %366 = vmatprep.subr.mxu0 0.0
    %367 = vmatpush1.msra.mxu0 %v231
    %368 = vmatprep.subr.mxu0 0.0
    %369 = vmatpush1.msra.mxu0 %v230
    %370 = vmatprep.subr.mxu0 0.0
    %371 = vmatpush2.msra.mxu0 0.0
    %372 = vmatprep.subr.mxu0 0.0
    %373 = vmatpush2.msra.mxu0 0.0
    %374 = vmatprep.subr.mxu0 0.0
    %375 = vmatpush2.msra.mxu0 0.0
    %376 = vmatprep.subr.mxu0 0.0
    %377 = vmatpush2.msra.mxu0 0.0
    %378 = vmatprep.subr.mxu0 0.0
    %379 = vmatpush2.msra.mxu0 0.0
    %380 = vmatprep.subr.mxu0 0.0
    %381 = vmatpush2.msra.mxu0 0.0
    %382 = vmatprep.subr.mxu0 0.0
    %383 = vmatpush2.msra.mxu0 0.0
    %384 = vmatprep.subr.mxu0 0.0
    %385 = vmatpush2.msra.mxu0 0.0
    %386 = vmatprep.subr.mxu0 0.0
    %387 = vmatpush2.msra.mxu0 0.0
    %388 = vmatprep.subr.mxu0 0.0
    %389 = vmatpush2.msra.mxu0 0.0
    %390 = vmatprep.subr.mxu0 0.0
    %391 = vmatpush2.msra.mxu0 0.0
    %392 = vmatprep.subr.mxu0 0.0
    %393 = vmatpush2.msra.mxu0 0.0
    %394 = vmatprep.subr.mxu0 0.0
    %395 = vmatpush2.msra.mxu0 0.0
    %396 = vmatprep.subr.mxu0 0.0
    %397 = vmatpush2.msra.mxu0 0.0
    %398 = vmatprep.subr.mxu0 0.0
    %399 = vmatpush2.msra.mxu0 0.0
    %400 = vmatprep.subr.mxu0 0.0
    %401 = vmatpush2.msra.mxu0 0.0
    %402 = vmatprep.mubr.f32.mxu0 0.0
    %403 = vmatmul.mubr.f32.gmra.mxu0 %v335
    %v404 = vpop.f32.mrf.mxu0
    %v405 = vadd.f32 0.0, %v404
    %v406 = vpop.f32.mrf.mxu0
    %407 = vdwg.mxu0
    %v408 = vadd.f32 %v337, %v405
    %v409 = vxor.u32 %v408, 2147483648
    %v410 = vmul.f32 %v409, 1.442695
    %v411 = vpow.pop %v410
    %v412 = vadd.f32 %v411, 1.0
    %v413 = vrcp.pop %v412
    %v414 = vmul.f32 1.0, %v413
    %v415 = vtanh.pop %v408
    %416 = vrot.lane.b32.xlu0 %v414, 96
    %v417 = vpop.permute.xlu0 %416
    %418 = vrot.lane.b32.xlu0 %v415, 64
    %v419 = vpop.permute.xlu0 %418
    %420 = vrot.lane.b32.xlu0 %v414, 32
    %v421 = vpop.permute.xlu0 %420
    %v422 = vmul.f32 %v417, %v333
    %v423 = vmul.f32 %v414, %v419
    %v424 = vadd.f32 %v422, %v423
    %v425 = vtanh.pop %v424
    %v426 = vmul.f32 %v421, %v425
    %427 = vst [vmem:[#allocation2 + $0x8] sm:$0xff] %v426
    %v428 = vld [vmem:[#allocation3 + $0x10] sm:$0xff]
    %429 = vmatprep.subr.mxu0 0.0
    %430 = vmatpush1.msra.mxu0 %v245
    %431 = vmatprep.subr.mxu0 0.0
    %432 = vmatpush1.msra.mxu0 %v244
    %433 = vmatprep.subr.mxu0 0.0
    %434 = vmatpush1.msra.mxu0 %v243
    %435 = vmatprep.subr.mxu0 0.0
    %436 = vmatpush1.msra.mxu0 %v242
    %437 = vmatprep.subr.mxu0 0.0
    %438 = vmatpush1.msra.mxu0 %v241
    %439 = vmatprep.subr.mxu0 0.0
    %440 = vmatpush1.msra.mxu0 %v240
    %441 = vmatprep.subr.mxu0 0.0
    %442 = vmatpush1.msra.mxu0 %v239
    %443 = vmatprep.subr.mxu0 0.0
    %444 = vmatpush1.msra.mxu0 %v238
    %445 = vmatprep.subr.mxu0 0.0
    %446 = vmatpush1.msra.mxu0 %v237
    %447 = vmatprep.subr.mxu0 0.0
    %448 = vmatpush1.msra.mxu0 %v236
    %449 = vmatprep.subr.mxu0 0.0
    %450 = vmatpush1.msra.mxu0 %v235
    %451 = vmatprep.subr.mxu0 0.0
    %452 = vmatpush1.msra.mxu0 %v234
    %453 = vmatprep.subr.mxu0 0.0
    %454 = vmatpush1.msra.mxu0 %v233
    %455 = vmatprep.subr.mxu0 0.0
    %456 = vmatpush1.msra.mxu0 %v232
    %457 = vmatprep.subr.mxu0 0.0
    %458 = vmatpush1.msra.mxu0 %v231
    %459 = vmatprep.subr.mxu0 0.0
    %460 = vmatpush1.msra.mxu0 %v230
    %461 = vmatprep.subr.mxu0 0.0
    %462 = vmatpush2.msra.mxu0 0.0
    %463 = vmatprep.subr.mxu0 0.0
    %464 = vmatpush2.msra.mxu0 0.0
    %465 = vmatprep.subr.mxu0 0.0
    %466 = vmatpush2.msra.mxu0 0.0
    %467 = vmatprep.subr.mxu0 0.0
    %468 = vmatpush2.msra.mxu0 0.0
    %469 = vmatprep.subr.mxu0 0.0
    %470 = vmatpush2.msra.mxu0 0.0
    %471 = vmatprep.subr.mxu0 0.0
    %472 = vmatpush2.msra.mxu0 0.0
    %473 = vmatprep.subr.mxu0 0.0
    %474 = vmatpush2.msra.mxu0 0.0
    %475 = vmatprep.subr.mxu0 0.0
    %476 = vmatpush2.msra.mxu0 0.0
    %477 = vmatprep.subr.mxu0 0.0
    %478 = vmatpush2.msra.mxu0 0.0
    %479 = vmatprep.subr.mxu0 0.0
    %480 = vmatpush2.msra.mxu0 0.0
    %481 = vmatprep.subr.mxu0 0.0
    %482 = vmatpush2.msra.mxu0 0.0
    %483 = vmatprep.subr.mxu0 0.0
    %484 = vmatpush2.msra.mxu0 0.0
    %485 = vmatprep.subr.mxu0 0.0
    %486 = vmatpush2.msra.mxu0 0.0
    %487 = vmatprep.subr.mxu0 0.0
    %488 = vmatpush2.msra.mxu0 0.0
    %489 = vmatprep.subr.mxu0 0.0
    %490 = vmatpush2.msra.mxu0 0.0
    %491 = vmatprep.subr.mxu0 0.0
    %492 = vmatpush2.msra.mxu0 0.0
    %493 = vmatprep.mubr.f32.mxu0 0.0
    %494 = vmatmul.mubr.f32.gmra.mxu0 %v426
    %v495 = vpop.f32.mrf.mxu0
    %v496 = vadd.f32 0.0, %v495
    %v497 = vpop.f32.mrf.mxu0
    %498 = vdwg.mxu0
    %v499 = vadd.f32 %v428, %v496
    %v500 = vxor.u32 %v499, 2147483648
    %v501 = vmul.f32 %v500, 1.442695
    %v502 = vpow.pop %v501
    %v503 = vadd.f32 %v502, 1.0
    %v504 = vrcp.pop %v503
    %v505 = vmul.f32 1.0, %v504
    %v506 = vtanh.pop %v499
    %507 = vrot.lane.b32.xlu0 %v505, 96
    %v508 = vpop.permute.xlu0 %507
    %509 = vrot.lane.b32.xlu0 %v506, 64
    %v510 = vpop.permute.xlu0 %509
    %511 = vrot.lane.b32.xlu0 %v505, 32
    %v512 = vpop.permute.xlu0 %511
    %v513 = vmul.f32 %v508, %v424
    %v514 = vmul.f32 %v505, %v510
    %v515 = vadd.f32 %v513, %v514
    %v516 = vtanh.pop %v515
    %v517 = vmul.f32 %v512, %v516
    %518 = vst [vmem:[#allocation2 + $0x10] sm:$0xff] %v517
    %v519 = vld [vmem:[#allocation3 + $0x18] sm:$0xff]
    %520 = vmatprep.subr.mxu0 0.0
    %521 = vmatpush1.msra.mxu0 %v245
    %522 = vmatprep.subr.mxu0 0.0
    %523 = vmatpush1.msra.mxu0 %v244
    %524 = vmatprep.subr.mxu0 0.0
    %525 = vmatpush1.msra.mxu0 %v243
    %526 = vmatprep.subr.mxu0 0.0
    %527 = vmatpush1.msra.mxu0 %v242
    %528 = vmatprep.subr.mxu0 0.0
    %529 = vmatpush1.msra.mxu0 %v241
    %530 = vmatprep.subr.mxu0 0.0
    %531 = vmatpush1.msra.mxu0 %v240
    %532 = vmatprep.subr.mxu0 0.0
    %533 = vmatpush1.msra.mxu0 %v239
    %534 = vmatprep.subr.mxu0 0.0
    %535 = vmatpush1.msra.mxu0 %v238
    %536 = vmatprep.subr.mxu0 0.0
    %537 = vmatpush1.msra.mxu0 %v237
    %538 = vmatprep.subr.mxu0 0.0
    %539 = vmatpush1.msra.mxu0 %v236
    %540 = vmatprep.subr.mxu0 0.0
    %541 = vmatpush1.msra.mxu0 %v235
    %542 = vmatprep.subr.mxu0 0.0
    %543 = vmatpush1.msra.mxu0 %v234
    %544 = vmatprep.subr.mxu0 0.0
    %545 = vmatpush1.msra.mxu0 %v233
    %546 = vmatprep.subr.mxu0 0.0
    %547 = vmatpush1.msra.mxu0 %v232
    %548 = vmatprep.subr.mxu0 0.0
    %549 = vmatpush1.msra.mxu0 %v231
    %550 = vmatprep.subr.mxu0 0.0
    %551 = vmatpush1.msra.mxu0 %v230
    %552 = vmatprep.subr.mxu0 0.0
    %553 = vmatpush2.msra.mxu0 0.0
    %554 = vmatprep.subr.mxu0 0.0
    %555 = vmatpush2.msra.mxu0 0.0
    %556 = vmatprep.subr.mxu0 0.0
    %557 = vmatpush2.msra.mxu0 0.0
    %558 = vmatprep.subr.mxu0 0.0
    %559 = vmatpush2.msra.mxu0 0.0
    %560 = vmatprep.subr.mxu0 0.0
    %561 = vmatpush2.msra.mxu0 0.0
    %562 = vmatprep.subr.mxu0 0.0
    %563 = vmatpush2.msra.mxu0 0.0
    %564 = vmatprep.subr.mxu0 0.0
    %565 = vmatpush2.msra.mxu0 0.0
    %566 = vmatprep.subr.mxu0 0.0
    %567 = vmatpush2.msra.mxu0 0.0
    %568 = vmatprep.subr.mxu0 0.0
    %569 = vmatpush2.msra.mxu0 0.0
    %570 = vmatprep.subr.mxu0 0.0
    %571 = vmatpush2.msra.mxu0 0.0
    %572 = vmatprep.subr.mxu0 0.0
    %573 = vmatpush2.msra.mxu0 0.0
    %574 = vmatprep.subr.mxu0 0.0
    %575 = vmatpush2.msra.mxu0 0.0
    %576 = vmatprep.subr.mxu0 0.0
    %577 = vmatpush2.msra.mxu0 0.0
    %578 = vmatprep.subr.mxu0 0.0
    %579 = vmatpush2.msra.mxu0 0.0
    %580 = vmatprep.subr.mxu0 0.0
    %581 = vmatpush2.msra.mxu0 0.0
    %582 = vmatprep.subr.mxu0 0.0
    %583 = vmatpush2.msra.mxu0 0.0
    %584 = vmatprep.mubr.f32.mxu0 0.0
    %585 = vmatmul.mubr.f32.gmra.mxu0 %v517
    %v586 = vpop.f32.mrf.mxu0
    %v587 = vadd.f32 0.0, %v586
    %v588 = vpop.f32.mrf.mxu0
    %589 = vdwg.mxu0
    %v590 = vadd.f32 %v519, %v587
    %v591 = vxor.u32 %v590, 2147483648
    %v592 = vmul.f32 %v591, 1.442695
    %v593 = vpow.pop %v592
    %v594 = vadd.f32 %v593, 1.0
    %v595 = vrcp.pop %v594
    %v596 = vmul.f32 1.0, %v595
    %v597 = vtanh.pop %v590
    %598 = vrot.lane.b32.xlu0 %v596, 96
    %v599 = vpop.permute.xlu0 %598
    %600 = vrot.lane.b32.xlu0 %v597, 64
    %v601 = vpop.permute.xlu0 %600
    %602 = vrot.lane.b32.xlu0 %v596, 32
    %v603 = vpop.permute.xlu0 %602
    %v604 = vmul.f32 %v599, %v515
    %v605 = vmul.f32 %v596, %v601
    %v606 = vadd.f32 %v604, %v605
    %v607 = vtanh.pop %v606
    %v608 = vmul.f32 %v603, %v607
    %609 = vst [vmem:[#allocation2 + $0x18] sm:$0xff] %v608
    %v610 = vld [vmem:[#allocation3 + $0x20] sm:$0xff]
    %611 = vmatprep.subr.mxu0 0.0
    %612 = vmatpush1.msra.mxu0 %v245
    %613 = vmatprep.subr.mxu0 0.0
    %614 = vmatpush1.msra.mxu0 %v244
    %615 = vmatprep.subr.mxu0 0.0
    %616 = vmatpush1.msra.mxu0 %v243
    %617 = vmatprep.subr.mxu0 0.0
    %618 = vmatpush1.msra.mxu0 %v242
    %619 = vmatprep.subr.mxu0 0.0
    %620 = vmatpush1.msra.mxu0 %v241
    %621 = vmatprep.subr.mxu0 0.0
    %622 = vmatpush1.msra.mxu0 %v240
    %623 = vmatprep.subr.mxu0 0.0
    %624 = vmatpush1.msra.mxu0 %v239
    %625 = vmatprep.subr.mxu0 0.0
    %626 = vmatpush1.msra.mxu0 %v238
    %627 = vmatprep.subr.mxu0 0.0
    %628 = vmatpush1.msra.mxu0 %v237
    %629 = vmatprep.subr.mxu0 0.0
    %630 = vmatpush1.msra.mxu0 %v236
    %631 = vmatprep.subr.mxu0 0.0
    %632 = vmatpush1.msra.mxu0 %v235
    %633 = vmatprep.subr.mxu0 0.0
    %634 = vmatpush1.msra.mxu0 %v234
    %635 = vmatprep.subr.mxu0 0.0
    %636 = vmatpush1.msra.mxu0 %v233
    %637 = vmatprep.subr.mxu0 0.0
    %638 = vmatpush1.msra.mxu0 %v232
    %639 = vmatprep.subr.mxu0 0.0
    %640 = vmatpush1.msra.mxu0 %v231
    %641 = vmatprep.subr.mxu0 0.0
    %642 = vmatpush1.msra.mxu0 %v230
    %643 = vmatprep.subr.mxu0 0.0
    %644 = vmatpush2.msra.mxu0 0.0
    %645 = vmatprep.subr.mxu0 0.0
    %646 = vmatpush2.msra.mxu0 0.0
    %647 = vmatprep.subr.mxu0 0.0
    %648 = vmatpush2.msra.mxu0 0.0
    %649 = vmatprep.subr.mxu0 0.0
    %650 = vmatpush2.msra.mxu0 0.0
    %651 = vmatprep.subr.mxu0 0.0
    %652 = vmatpush2.msra.mxu0 0.0
    %653 = vmatprep.subr.mxu0 0.0
    %654 = vmatpush2.msra.mxu0 0.0
    %655 = vmatprep.subr.mxu0 0.0
    %656 = vmatpush2.msra.mxu0 0.0
    %657 = vmatprep.subr.mxu0 0.0
    %658 = vmatpush2.msra.mxu0 0.0
    %659 = vmatprep.subr.mxu0 0.0
    %660 = vmatpush2.msra.mxu0 0.0
    %661 = vmatprep.subr.mxu0 0.0
    %662 = vmatpush2.msra.mxu0 0.0
    %663 = vmatprep.subr.mxu0 0.0
    %664 = vmatpush2.msra.mxu0 0.0
    %665 = vmatprep.subr.mxu0 0.0
    %666 = vmatpush2.msra.mxu0 0.0
    %667 = vmatprep.subr.mxu0 0.0
    %668 = vmatpush2.msra.mxu0 0.0
    %669 = vmatprep.subr.mxu0 0.0
    %670 = vmatpush2.msra.mxu0 0.0
    %671 = vmatprep.subr.mxu0 0.0
    %672 = vmatpush2.msra.mxu0 0.0
    %673 = vmatprep.subr.mxu0 0.0
    %674 = vmatpush2.msra.mxu0 0.0
    %675 = vmatprep.mubr.f32.mxu0 0.0
    %676 = vmatmul.mubr.f32.gmra.mxu0 %v608
    %v677 = vpop.f32.mrf.mxu0
    %v678 = vadd.f32 0.0, %v677
    %v679 = vpop.f32.mrf.mxu0
    %680 = vdwg.mxu0
    %v681 = vadd.f32 %v610, %v678
    %v682 = vxor.u32 %v681, 2147483648
    %v683 = vmul.f32 %v682, 1.442695
    %v684 = vpow.pop %v683
    %v685 = vadd.f32 %v684, 1.0
    %v686 = vrcp.pop %v685
    %v687 = vmul.f32 1.0, %v686
    %v688 = vtanh.pop %v681
    %689 = vrot.lane.b32.xlu0 %v687, 96
    %v690 = vpop.permute.xlu0 %689
    %691 = vrot.lane.b32.xlu0 %v688, 64
    %v692 = vpop.permute.xlu0 %691
    %693 = vrot.lane.b32.xlu0 %v687, 32
    %v694 = vpop.permute.xlu0 %693
    %v695 = vmul.f32 %v690, %v606
    %v696 = vmul.f32 %v687, %v692
    %v697 = vadd.f32 %v695, %v696
    %v698 = vtanh.pop %v697
    %v699 = vmul.f32 %v694, %v698
    %700 = vst [vmem:[#allocation2 + $0x20] sm:$0xff] %v699
    %v701 = vld [vmem:[#allocation3 + $0x28] sm:$0xff]
    %702 = vmatprep.subr.mxu0 0.0
    %703 = vmatpush1.msra.mxu0 %v245
    %704 = vmatprep.subr.mxu0 0.0
    %705 = vmatpush1.msra.mxu0 %v244
    %706 = vmatprep.subr.mxu0 0.0
    %707 = vmatpush1.msra.mxu0 %v243
    %708 = vmatprep.subr.mxu0 0.0
    %709 = vmatpush1.msra.mxu0 %v242
    %710 = vmatprep.subr.mxu0 0.0
    %711 = vmatpush1.msra.mxu0 %v241
    %712 = vmatprep.subr.mxu0 0.0
    %713 = vmatpush1.msra.mxu0 %v240
    %714 = vmatprep.subr.mxu0 0.0
    %715 = vmatpush1.msra.mxu0 %v239
    %716 = vmatprep.subr.mxu0 0.0
    %717 = vmatpush1.msra.mxu0 %v238
    %718 = vmatprep.subr.mxu0 0.0
    %719 = vmatpush1.msra.mxu0 %v237
    %720 = vmatprep.subr.mxu0 0.0
    %721 = vmatpush1.msra.mxu0 %v236
    %722 = vmatprep.subr.mxu0 0.0
    %723 = vmatpush1.msra.mxu0 %v235
    %724 = vmatprep.subr.mxu0 0.0
    %725 = vmatpush1.msra.mxu0 %v234
    %726 = vmatprep.subr.mxu0 0.0
    %727 = vmatpush1.msra.mxu0 %v233
    %728 = vmatprep.subr.mxu0 0.0
    %729 = vmatpush1.msra.mxu0 %v232
    %730 = vmatprep.subr.mxu0 0.0
    %731 = vmatpush1.msra.mxu0 %v231
    %732 = vmatprep.subr.mxu0 0.0
    %733 = vmatpush1.msra.mxu0 %v230
    %734 = vmatprep.subr.mxu0 0.0
    %735 = vmatpush2.msra.mxu0 0.0
    %736 = vmatprep.subr.mxu0 0.0
    %737 = vmatpush2.msra.mxu0 0.0
    %738 = vmatprep.subr.mxu0 0.0
    %739 = vmatpush2.msra.mxu0 0.0
    %740 = vmatprep.subr.mxu0 0.0
    %741 = vmatpush2.msra.mxu0 0.0
    %742 = vmatprep.subr.mxu0 0.0
    %743 = vmatpush2.msra.mxu0 0.0
    %744 = vmatprep.subr.mxu0 0.0
    %745 = vmatpush2.msra.mxu0 0.0
    %746 = vmatprep.subr.mxu0 0.0
    %747 = vmatpush2.msra.mxu0 0.0
    %748 = vmatprep.subr.mxu0 0.0
    %749 = vmatpush2.msra.mxu0 0.0
    %750 = vmatprep.subr.mxu0 0.0
    %751 = vmatpush2.msra.mxu0 0.0
    %752 = vmatprep.subr.mxu0 0.0
    %753 = vmatpush2.msra.mxu0 0.0
    %754 = vmatprep.subr.mxu0 0.0
    %755 = vmatpush2.msra.mxu0 0.0
    %756 = vmatprep.subr.mxu0 0.0
    %757 = vmatpush2.msra.mxu0 0.0
    %758 = vmatprep.subr.mxu0 0.0
    %759 = vmatpush2.msra.mxu0 0.0
    %760 = vmatprep.subr.mxu0 0.0
    %761 = vmatpush2.msra.mxu0 0.0
    %762 = vmatprep.subr.mxu0 0.0
    %763 = vmatpush2.msra.mxu0 0.0
    %764 = vmatprep.subr.mxu0 0.0
    %765 = vmatpush2.msra.mxu0 0.0
    %766 = vmatprep.mubr.f32.mxu0 0.0
    %767 = vmatmul.mubr.f32.gmra.mxu0 %v699
    %v768 = vpop.f32.mrf.mxu0
    %v769 = vadd.f32 0.0, %v768
    %v770 = vpop.f32.mrf.mxu0
    %771 = vdwg.mxu0
    %v772 = vadd.f32 %v701, %v769
    %v773 = vxor.u32 %v772, 2147483648
    %v774 = vmul.f32 %v773, 1.442695
    %v775 = vpow.pop %v774
    %v776 = vadd.f32 %v775, 1.0
    %v777 = vrcp.pop %v776
    %v778 = vmul.f32 1.0, %v777
    %v779 = vtanh.pop %v772
    %780 = vrot.lane.b32.xlu0 %v778, 96
    %v781 = vpop.permute.xlu0 %780
    %782 = vrot.lane.b32.xlu0 %v779, 64
    %v783 = vpop.permute.xlu0 %782
    %784 = vrot.lane.b32.xlu0 %v778, 32
    %v785 = vpop.permute.xlu0 %784
    %v786 = vmul.f32 %v781, %v697
    %v787 = vmul.f32 %v778, %v783
    %v788 = vadd.f32 %v786, %v787
    %v789 = vtanh.pop %v788
    %v790 = vmul.f32 %v785, %v789
    %791 = vst [vmem:[#allocation2 + $0x28] sm:$0xff] %v790
    %v792 = vld [vmem:[#allocation3 + $0x30] sm:$0xff]
    %793 = vmatprep.subr.mxu0 0.0
    %794 = vmatpush1.msra.mxu0 %v245
    %795 = vmatprep.subr.mxu0 0.0
    %796 = vmatpush1.msra.mxu0 %v244
    %797 = vmatprep.subr.mxu0 0.0
    %798 = vmatpush1.msra.mxu0 %v243
    %799 = vmatprep.subr.mxu0 0.0
    %800 = vmatpush1.msra.mxu0 %v242
    %801 = vmatprep.subr.mxu0 0.0
    %802 = vmatpush1.msra.mxu0 %v241
    %803 = vmatprep.subr.mxu0 0.0
    %804 = vmatpush1.msra.mxu0 %v240
    %805 = vmatprep.subr.mxu0 0.0
    %806 = vmatpush1.msra.mxu0 %v239
    %807 = vmatprep.subr.mxu0 0.0
    %808 = vmatpush1.msra.mxu0 %v238
    %809 = vmatprep.subr.mxu0 0.0
    %810 = vmatpush1.msra.mxu0 %v237
    %811 = vmatprep.subr.mxu0 0.0
    %812 = vmatpush1.msra.mxu0 %v236
    %813 = vmatprep.subr.mxu0 0.0
    %814 = vmatpush1.msra.mxu0 %v235
    %815 = vmatprep.subr.mxu0 0.0
    %816 = vmatpush1.msra.mxu0 %v234
    %817 = vmatprep.subr.mxu0 0.0
    %818 = vmatpush1.msra.mxu0 %v233
    %819 = vmatprep.subr.mxu0 0.0
    %820 = vmatpush1.msra.mxu0 %v232
    %821 = vmatprep.subr.mxu0 0.0
    %822 = vmatpush1.msra.mxu0 %v231
    %823 = vmatprep.subr.mxu0 0.0
    %824 = vmatpush1.msra.mxu0 %v230
    %825 = vmatprep.subr.mxu0 0.0
    %826 = vmatpush2.msra.mxu0 0.0
    %827 = vmatprep.subr.mxu0 0.0
    %828 = vmatpush2.msra.mxu0 0.0
    %829 = vmatprep.subr.mxu0 0.0
    %830 = vmatpush2.msra.mxu0 0.0
    %831 = vmatprep.subr.mxu0 0.0
    %832 = vmatpush2.msra.mxu0 0.0
    %833 = vmatprep.subr.mxu0 0.0
    %834 = vmatpush2.msra.mxu0 0.0
    %835 = vmatprep.subr.mxu0 0.0
    %836 = vmatpush2.msra.mxu0 0.0
    %837 = vmatprep.subr.mxu0 0.0
    %838 = vmatpush2.msra.mxu0 0.0
    %839 = vmatprep.subr.mxu0 0.0
    %840 = vmatpush2.msra.mxu0 0.0
    %841 = vmatprep.subr.mxu0 0.0
    %842 = vmatpush2.msra.mxu0 0.0
    %843 = vmatprep.subr.mxu0 0.0
    %844 = vmatpush2.msra.mxu0 0.0
    %845 = vmatprep.subr.mxu0 0.0
    %846 = vmatpush2.msra.mxu0 0.0
    %847 = vmatprep.subr.mxu0 0.0
    %848 = vmatpush2.msra.mxu0 0.0
    %849 = vmatprep.subr.mxu0 0.0
    %850 = vmatpush2.msra.mxu0 0.0
    %851 = vmatprep.subr.mxu0 0.0
    %852 = vmatpush2.msra.mxu0 0.0
    %853 = vmatprep.subr.mxu0 0.0
    %854 = vmatpush2.msra.mxu0 0.0
    %855 = vmatprep.subr.mxu0 0.0
    %856 = vmatpush2.msra.mxu0 0.0
    %857 = vmatprep.mubr.f32.mxu0 0.0
    %858 = vmatmul.mubr.f32.gmra.mxu0 %v790
    %v859 = vpop.f32.mrf.mxu0
    %v860 = vadd.f32 0.0, %v859
    %v861 = vpop.f32.mrf.mxu0
    %862 = vdwg.mxu0
    %v863 = vadd.f32 %v792, %v860
    %v864 = vxor.u32 %v863, 2147483648
    %v865 = vmul.f32 %v864, 1.442695
    %v866 = vpow.pop %v865
    %v867 = vadd.f32 %v866, 1.0
    %v868 = vrcp.pop %v867
    %v869 = vmul.f32 1.0, %v868
    %v870 = vtanh.pop %v863
    %871 = vrot.lane.b32.xlu0 %v869, 96
    %v872 = vpop.permute.xlu0 %871
    %873 = vrot.lane.b32.xlu0 %v870, 64
    %v874 = vpop.permute.xlu0 %873
    %875 = vrot.lane.b32.xlu0 %v869, 32
    %v876 = vpop.permute.xlu0 %875
    %v877 = vmul.f32 %v872, %v788
    %v878 = vmul.f32 %v869, %v874
    %v879 = vadd.f32 %v877, %v878
    %v880 = vtanh.pop %v879
    %v881 = vmul.f32 %v876, %v880
    %882 = vst [vmem:[#allocation2 + $0x30] sm:$0xff] %v881
    %v883 = vld [vmem:[#allocation3 + $0x38] sm:$0xff]
    %884 = vmatprep.subr.mxu0 0.0
    %885 = vmatpush1.msra.mxu0 %v245
    %886 = vmatprep.subr.mxu0 0.0
    %887 = vmatpush1.msra.mxu0 %v244
    %888 = vmatprep.subr.mxu0 0.0
    %889 = vmatpush1.msra.mxu0 %v243
    %890 = vmatprep.subr.mxu0 0.0
    %891 = vmatpush1.msra.mxu0 %v242
    %892 = vmatprep.subr.mxu0 0.0
    %893 = vmatpush1.msra.mxu0 %v241
    %894 = vmatprep.subr.mxu0 0.0
    %895 = vmatpush1.msra.mxu0 %v240
    %896 = vmatprep.subr.mxu0 0.0
    %897 = vmatpush1.msra.mxu0 %v239
    %898 = vmatprep.subr.mxu0 0.0
    %899 = vmatpush1.msra.mxu0 %v238
    %900 = vmatprep.subr.mxu0 0.0
    %901 = vmatpush1.msra.mxu0 %v237
    %902 = vmatprep.subr.mxu0 0.0
    %903 = vmatpush1.msra.mxu0 %v236
    %904 = vmatprep.subr.mxu0 0.0
    %905 = vmatpush1.msra.mxu0 %v235
    %906 = vmatprep.subr.mxu0 0.0
    %907 = vmatpush1.msra.mxu0 %v234
    %908 = vmatprep.subr.mxu0 0.0
    %909 = vmatpush1.msra.mxu0 %v233
    %910 = vmatprep.subr.mxu0 0.0
    %911 = vmatpush1.msra.mxu0 %v232
    %912 = vmatprep.subr.mxu0 0.0
    %913 = vmatpush1.msra.mxu0 %v231
    %914 = vmatprep.subr.mxu0 0.0
    %915 = vmatpush1.msra.mxu0 %v230
    %916 = vmatprep.subr.mxu0 0.0
    %917 = vmatpush2.msra.mxu0 0.0
    %918 = vmatprep.subr.mxu0 0.0
    %919 = vmatpush2.msra.mxu0 0.0
    %920 = vmatprep.subr.mxu0 0.0
    %921 = vmatpush2.msra.mxu0 0.0
    %922 = vmatprep.subr.mxu0 0.0
    %923 = vmatpush2.msra.mxu0 0.0
    %924 = vmatprep.subr.mxu0 0.0
    %925 = vmatpush2.msra.mxu0 0.0
    %926 = vmatprep.subr.mxu0 0.0
    %927 = vmatpush2.msra.mxu0 0.0
    %928 = vmatprep.subr.mxu0 0.0
    %929 = vmatpush2.msra.mxu0 0.0
    %930 = vmatprep.subr.mxu0 0.0
    %931 = vmatpush2.msra.mxu0 0.0
    %932 = vmatprep.subr.mxu0 0.0
    %933 = vmatpush2.msra.mxu0 0.0
    %934 = vmatprep.subr.mxu0 0.0
    %935 = vmatpush2.msra.mxu0 0.0
    %936 = vmatprep.subr.mxu0 0.0
    %937 = vmatpush2.msra.mxu0 0.0
    %938 = vmatprep.subr.mxu0 0.0
    %939 = vmatpush2.msra.mxu0 0.0
    %940 = vmatprep.subr.mxu0 0.0
    %941 = vmatpush2.msra.mxu0 0.0
    %942 = vmatprep.subr.mxu0 0.0
    %943 = vmatpush2.msra.mxu0 0.0
    %944 = vmatprep.subr.mxu0 0.0
    %945 = vmatpush2.msra.mxu0 0.0
    %946 = vmatprep.subr.mxu0 0.0
    %947 = vmatpush2.msra.mxu0 0.0
    %948 = vmatprep.mubr.f32.mxu0 0.0
    %949 = vmatmul.mubr.f32.gmra.mxu0 %v881
    %v950 = vpop.f32.mrf.mxu0
    %v951 = vadd.f32 0.0, %v950
    %v952 = vpop.f32.mrf.mxu0
    %953 = vdwg.mxu0
    %v954 = vadd.f32 %v883, %v951
    %v955 = vxor.u32 %v954, 2147483648
    %v956 = vmul.f32 %v955, 1.442695
    %v957 = vpow.pop %v956
    %v958 = vadd.f32 %v957, 1.0
    %v959 = vrcp.pop %v958
    %v960 = vmul.f32 1.0, %v959
    %v961 = vtanh.pop %v954
    %962 = vrot.lane.b32.xlu0 %v960, 96
    %v963 = vpop.permute.xlu0 %962
    %964 = vrot.lane.b32.xlu0 %v961, 64
    %v965 = vpop.permute.xlu0 %964
    %966 = vrot.lane.b32.xlu0 %v960, 32
    %v967 = vpop.permute.xlu0 %966
    %v968 = vmul.f32 %v963, %v879
    %v969 = vmul.f32 %v960, %v965
    %v970 = vadd.f32 %v968, %v969
    %v971 = vtanh.pop %v970
    %v972 = vmul.f32 %v967, %v971
    %973 = vst [vmem:[#allocation2 + $0x38] sm:$0xff] %v972
    %v974 = vld [vmem:[#allocation2] sm:$0xff]
    %v975 = vld [vmem:[#allocation2 + $0x8] sm:$0xff]
    %v976 = vld [vmem:[#allocation2 + $0x10] sm:$0xff]
    %v977 = vld [vmem:[#allocation2 + $0x18] sm:$0xff]
    %v978 = vld [vmem:[#allocation2 + $0x20] sm:$0xff]
    %v979 = vld [vmem:[#allocation2 + $0x28] sm:$0xff]
    %v980 = vld [vmem:[#allocation2 + $0x30] sm:$0xff]
    %v981 = vld [vmem:[#allocation2 + $0x38] sm:$0xff]
    %v982 = vld [vmem:[#allocation7] sm:$0xff]
    %v983 = vld [vmem:[#allocation7 + $0x8] sm:$0xff]
    %v984 = vld [vmem:[#allocation7 + $0x10] sm:$0xff]
    %v985 = vld [vmem:[#allocation7 + $0x18] sm:$0xff]
    %v986 = vld [vmem:[#allocation7 + $0x20] sm:$0xff]
    %v987 = vld [vmem:[#allocation7 + $0x28] sm:$0xff]
    %v988 = vld [vmem:[#allocation7 + $0x30] sm:$0xff]
    %v989 = vld [vmem:[#allocation7 + $0x38] sm:$0xff]
    %v990 = vld [vmem:[#allocation7 + $0x40] sm:$0xff]
    %v991 = vld [vmem:[#allocation7 + $0x48] sm:$0xff]
    %v992 = vld [vmem:[#allocation7 + $0x50] sm:$0xff]
    %v993 = vld [vmem:[#allocation7 + $0x58] sm:$0xff]
    %v994 = vld [vmem:[#allocation7 + $0x60] sm:$0xff]
    %v995 = vld [vmem:[#allocation7 + $0x68] sm:$0xff]
    %v996 = vld [vmem:[#allocation7 + $0x70] sm:$0xff]
    %v997 = vld [vmem:[#allocation7 + $0x78] sm:$0xff]
    %v998 = vld [vmem:[%s6] sm:$0x1]
    %v1000 = vlaneseq
    %v1001 = vshrl.u32 %v1000, 7
    %v1002 = vsub.s32 0, %v1001
    %v1003 = vrot.slane %v998, %v1002
    %1005 = vmatprep.subr.mxu0 0.0
    %1006 = vmatpush1.msra.mxu0 %v997
    %1007 = vmatprep.subr.mxu0 0.0
    %1008 = vmatpush1.msra.mxu0 %v996
    %1009 = vmatprep.subr.mxu0 0.0
    %1010 = vmatpush1.msra.mxu0 %v995
    %1011 = vmatprep.subr.mxu0 0.0
    %1012 = vmatpush1.msra.mxu0 %v994
    %1013 = vmatprep.subr.mxu0 0.0
    %1014 = vmatpush1.msra.mxu0 %v993
    %1015 = vmatprep.subr.mxu0 0.0
    %1016 = vmatpush1.msra.mxu0 %v992
    %1017 = vmatprep.subr.mxu0 0.0
    %1018 = vmatpush1.msra.mxu0 %v991
    %1019 = vmatprep.subr.mxu0 0.0
    %1020 = vmatpush1.msra.mxu0 %v990
    %1021 = vmatprep.subr.mxu0 0.0
    %1022 = vmatpush1.msra.mxu0 %v989
    %1023 = vmatprep.subr.mxu0 0.0
    %1024 = vmatpush1.msra.mxu0 %v988
    %1025 = vmatprep.subr.mxu0 0.0
    %1026 = vmatpush1.msra.mxu0 %v987
    %1027 = vmatprep.subr.mxu0 0.0
    %1028 = vmatpush1.msra.mxu0 %v986
    %1029 = vmatprep.subr.mxu0 0.0
    %1030 = vmatpush1.msra.mxu0 %v985
    %1031 = vmatprep.subr.mxu0 0.0
    %1032 = vmatpush1.msra.mxu0 %v984
    %1033 = vmatprep.subr.mxu0 0.0
    %1034 = vmatpush1.msra.mxu0 %v983
    %1035 = vmatprep.subr.mxu0 0.0
    %1036 = vmatpush1.msra.mxu0 %v982
    %1037 = vmatprep.subr.mxu0 0.0
    %1038 = vmatpush2.msra.mxu0 0.0
    %1039 = vmatprep.subr.mxu0 0.0
    %1040 = vmatpush2.msra.mxu0 0.0
    %1041 = vmatprep.subr.mxu0 0.0
    %1042 = vmatpush2.msra.mxu0 0.0
    %1043 = vmatprep.subr.mxu0 0.0
    %1044 = vmatpush2.msra.mxu0 0.0
    %1045 = vmatprep.subr.mxu0 0.0
    %1046 = vmatpush2.msra.mxu0 0.0
    %1047 = vmatprep.subr.mxu0 0.0
    %1048 = vmatpush2.msra.mxu0 0.0
    %1049 = vmatprep.subr.mxu0 0.0
    %1050 = vmatpush2.msra.mxu0 0.0
    %1051 = vmatprep.subr.mxu0 0.0
    %1052 = vmatpush2.msra.mxu0 0.0
    %1053 = vmatprep.subr.mxu0 0.0
    %1054 = vmatpush2.msra.mxu0 0.0
    %1055 = vmatprep.subr.mxu0 0.0
    %1056 = vmatpush2.msra.mxu0 0.0
    %1057 = vmatprep.subr.mxu0 0.0
    %1058 = vmatpush2.msra.mxu0 0.0
    %1059 = vmatprep.subr.mxu0 0.0
    %1060 = vmatpush2.msra.mxu0 0.0
    %1061 = vmatprep.subr.mxu0 0.0
    %1062 = vmatpush2.msra.mxu0 0.0
    %1063 = vmatprep.subr.mxu0 0.0
    %1064 = vmatpush2.msra.mxu0 0.0
    %1065 = vmatprep.subr.mxu0 0.0
    %1066 = vmatpush2.msra.mxu0 0.0
    %1067 = vmatprep.subr.mxu0 0.0
    %1068 = vmatpush2.msra.mxu0 0.0
    %1069 = vmatprep.mubr.f32.mxu0 0.0
    %1070 = vmatmul.mubr.f32.gmra.mxu0 %v974
    %v1071 = vpop.f32.mrf.mxu0
    %v1072 = vadd.f32 %v1003, %v1071
    %v1073 = vpop.f32.mrf.mxu0
    %1074 = vmatprep.mubr.f32.mxu0 0.0
    %1075 = vmatmul.mubr.f32.gmra.mxu0 %v975
    %v1076 = vpop.f32.mrf.mxu0
    %v1077 = vadd.f32 %v1003, %v1076
    %v1078 = vpop.f32.mrf.mxu0
    %1079 = vmatprep.mubr.f32.mxu0 0.0
    %1080 = vmatmul.mubr.f32.gmra.mxu0 %v976
    %v1081 = vpop.f32.mrf.mxu0
    %v1082 = vadd.f32 %v1003, %v1081
    %v1083 = vpop.f32.mrf.mxu0
    %1084 = vmatprep.mubr.f32.mxu0 0.0
    %1085 = vmatmul.mubr.f32.gmra.mxu0 %v977
    %v1086 = vpop.f32.mrf.mxu0
    %v1087 = vadd.f32 %v1003, %v1086
    %v1088 = vpop.f32.mrf.mxu0
    %1089 = vmatprep.mubr.f32.mxu0 0.0
    %1090 = vmatmul.mubr.f32.gmra.mxu0 %v978
    %v1091 = vpop.f32.mrf.mxu0
    %v1092 = vadd.f32 %v1003, %v1091
    %v1093 = vpop.f32.mrf.mxu0
    %1094 = vmatprep.mubr.f32.mxu0 0.0
    %1095 = vmatmul.mubr.f32.gmra.mxu0 %v979
    %v1096 = vpop.f32.mrf.mxu0
    %v1097 = vadd.f32 %v1003, %v1096
    %v1098 = vpop.f32.mrf.mxu0
    %1099 = vmatprep.mubr.f32.mxu0 0.0
    %1100 = vmatmul.mubr.f32.gmra.mxu0 %v980
    %v1101 = vpop.f32.mrf.mxu0
    %v1102 = vadd.f32 %v1003, %v1101
    %v1103 = vpop.f32.mrf.mxu0
    %1104 = vmatprep.mubr.f32.mxu0 0.0
    %1105 = vmatmul.mubr.f32.gmra.mxu0 %v981
    %v1106 = vpop.f32.mrf.mxu0
    %v1107 = vadd.f32 %v1003, %v1106
    %v1108 = vpop.f32.mrf.mxu0
    %1109 = vdwg.mxu0
    %1110 = vst [vmem:[#allocation3] sm:$0xff] %v1072
    %1111 = vst [vmem:[#allocation3 + $0x8] sm:$0xff] %v1077
    %1112 = vst [vmem:[#allocation3 + $0x10] sm:$0xff] %v1082
    %1113 = vst [vmem:[#allocation3 + $0x18] sm:$0xff] %v1087
    %1114 = vst [vmem:[#allocation3 + $0x20] sm:$0xff] %v1092
    %1115 = vst [vmem:[#allocation3 + $0x28] sm:$0xff] %v1097
    %1116 = vst [vmem:[#allocation3 + $0x30] sm:$0xff] %v1102
    %1117 = vst [vmem:[#allocation3 + $0x38] sm:$0xff] %v1107
    %v1118 = vld [vmem:[#allocation9] sm:$0xff]
    %v1119 = vld [vmem:[#allocation9 + $0x8] sm:$0xff]
    %v1120 = vld [vmem:[#allocation9 + $0x10] sm:$0xff]
    %v1121 = vld [vmem:[#allocation9 + $0x18] sm:$0xff]
    %v1122 = vld [vmem:[#allocation9 + $0x20] sm:$0xff]
    %v1123 = vld [vmem:[#allocation9 + $0x28] sm:$0xff]
    %v1124 = vld [vmem:[#allocation9 + $0x30] sm:$0xff]
    %v1125 = vld [vmem:[#allocation9 + $0x38] sm:$0xff]
    %v1126 = vld [vmem:[#allocation9 + $0x40] sm:$0xff]
    %v1127 = vld [vmem:[#allocation9 + $0x48] sm:$0xff]
    %v1128 = vld [vmem:[#allocation9 + $0x50] sm:$0xff]
    %v1129 = vld [vmem:[#allocation9 + $0x58] sm:$0xff]
    %v1130 = vld [vmem:[#allocation9 + $0x60] sm:$0xff]
    %v1131 = vld [vmem:[#allocation9 + $0x68] sm:$0xff]
    %v1132 = vld [vmem:[#allocation9 + $0x70] sm:$0xff]
    %v1133 = vld [vmem:[#allocation9 + $0x78] sm:$0xff]
    %v1134 = vld [vmem:[#allocation3] sm:$0xff]
    %1135 = vmatprep.subr.mxu0 0.0
    %1136 = vmatpush1.msra.mxu0 %v1133
    %1137 = vmatprep.subr.mxu0 0.0
    %1138 = vmatpush1.msra.mxu0 %v1132
    %1139 = vmatprep.subr.mxu0 0.0
    %1140 = vmatpush1.msra.mxu0 %v1131
    %1141 = vmatprep.subr.mxu0 0.0
    %1142 = vmatpush1.msra.mxu0 %v1130
    %1143 = vmatprep.subr.mxu0 0.0
    %1144 = vmatpush1.msra.mxu0 %v1129
    %1145 = vmatprep.subr.mxu0 0.0
    %1146 = vmatpush1.msra.mxu0 %v1128
    %1147 = vmatprep.subr.mxu0 0.0
    %1148 = vmatpush1.msra.mxu0 %v1127
    %1149 = vmatprep.subr.mxu0 0.0
    %1150 = vmatpush1.msra.mxu0 %v1126
    %1151 = vmatprep.subr.mxu0 0.0
    %1152 = vmatpush1.msra.mxu0 %v1125
    %1153 = vmatprep.subr.mxu0 0.0
    %1154 = vmatpush1.msra.mxu0 %v1124
    %1155 = vmatprep.subr.mxu0 0.0
    %1156 = vmatpush1.msra.mxu0 %v1123
    %1157 = vmatprep.subr.mxu0 0.0
    %1158 = vmatpush1.msra.mxu0 %v1122
    %1159 = vmatprep.subr.mxu0 0.0
    %1160 = vmatpush1.msra.mxu0 %v1121
    %1161 = vmatprep.subr.mxu0 0.0
    %1162 = vmatpush1.msra.mxu0 %v1120
    %1163 = vmatprep.subr.mxu0 0.0
    %1164 = vmatpush1.msra.mxu0 %v1119
    %1165 = vmatprep.subr.mxu0 0.0
    %1166 = vmatpush1.msra.mxu0 %v1118
    %1167 = vmatprep.subr.mxu0 0.0
    %1168 = vmatpush2.msra.mxu0 0.0
    %1169 = vmatprep.subr.mxu0 0.0
    %1170 = vmatpush2.msra.mxu0 0.0
    %1171 = vmatprep.subr.mxu0 0.0
    %1172 = vmatpush2.msra.mxu0 0.0
    %1173 = vmatprep.subr.mxu0 0.0
    %1174 = vmatpush2.msra.mxu0 0.0
    %1175 = vmatprep.subr.mxu0 0.0
    %1176 = vmatpush2.msra.mxu0 0.0
    %1177 = vmatprep.subr.mxu0 0.0
    %1178 = vmatpush2.msra.mxu0 0.0
    %1179 = vmatprep.subr.mxu0 0.0
    %1180 = vmatpush2.msra.mxu0 0.0
    %1181 = vmatprep.subr.mxu0 0.0
    %1182 = vmatpush2.msra.mxu0 0.0
    %1183 = vmatprep.subr.mxu0 0.0
    %1184 = vmatpush2.msra.mxu0 0.0
    %1185 = vmatprep.subr.mxu0 0.0
    %1186 = vmatpush2.msra.mxu0 0.0
    %1187 = vmatprep.subr.mxu0 0.0
    %1188 = vmatpush2.msra.mxu0 0.0
    %1189 = vmatprep.subr.mxu0 0.0
    %1190 = vmatpush2.msra.mxu0 0.0
    %1191 = vmatprep.subr.mxu0 0.0
    %1192 = vmatpush2.msra.mxu0 0.0
    %1193 = vmatprep.subr.mxu0 0.0
    %1194 = vmatpush2.msra.mxu0 0.0
    %1195 = vmatprep.subr.mxu0 0.0
    %1196 = vmatpush2.msra.mxu0 0.0
    %1197 = vmatprep.subr.mxu0 0.0
    %1198 = vmatpush2.msra.mxu0 0.0
    %1199 = vmatprep.mubr.f32.mxu0 0.0
    %1200 = vmatmul.mubr.f32.gmra.mxu0 0.0
    %v1201 = vpop.f32.mrf.mxu0
    %v1202 = vadd.f32 0.0, %v1201
    %v1203 = vpop.f32.mrf.mxu0
    %1204 = vdwg.mxu0
    %v1205 = vadd.f32 %v1134, %v1202
    %v1206 = vxor.u32 %v1205, 2147483648
    %v1207 = vmul.f32 %v1206, 1.442695
    %v1208 = vpow.pop %v1207
    %v1209 = vadd.f32 %v1208, 1.0
    %v1210 = vrcp.pop %v1209
    %v1211 = vmul.f32 1.0, %v1210
    %v1212 = vtanh.pop %v1205
    %1213 = vrot.lane.b32.xlu0 %v1211, 96
    %v1214 = vpop.permute.xlu0 %1213
    %1215 = vrot.lane.b32.xlu0 %v1212, 64
    %v1216 = vpop.permute.xlu0 %1215
    %1217 = vrot.lane.b32.xlu0 %v1211, 32
    %v1218 = vpop.permute.xlu0 %1217
    %v1219 = vmul.f32 %v1214, 0.0
    %v1220 = vmul.f32 %v1211, %v1216
    %v1221 = vadd.f32 %v1219, %v1220
    %v1222 = vtanh.pop %v1221
    %v1223 = vmul.f32 %v1218, %v1222
    %v1224 = vld [vmem:[#allocation3 + $0x8] sm:$0xff]
    %1225 = vmatprep.subr.mxu0 0.0
    %1226 = vmatpush1.msra.mxu0 %v1133
    %1227 = vmatprep.subr.mxu0 0.0
    %1228 = vmatpush1.msra.mxu0 %v1132
    %1229 = vmatprep.subr.mxu0 0.0
    %1230 = vmatpush1.msra.mxu0 %v1131
    %1231 = vmatprep.subr.mxu0 0.0
    %1232 = vmatpush1.msra.mxu0 %v1130
    %1233 = vmatprep.subr.mxu0 0.0
    %1234 = vmatpush1.msra.mxu0 %v1129
    %1235 = vmatprep.subr.mxu0 0.0
    %1236 = vmatpush1.msra.mxu0 %v1128
    %1237 = vmatprep.subr.mxu0 0.0
    %1238 = vmatpush1.msra.mxu0 %v1127
    %1239 = vmatprep.subr.mxu0 0.0
    %1240 = vmatpush1.msra.mxu0 %v1126
    %1241 = vmatprep.subr.mxu0 0.0
    %1242 = vmatpush1.msra.mxu0 %v1125
    %1243 = vmatprep.subr.mxu0 0.0
    %1244 = vmatpush1.msra.mxu0 %v1124
    %1245 = vmatprep.subr.mxu0 0.0
    %1246 = vmatpush1.msra.mxu0 %v1123
    %1247 = vmatprep.subr.mxu0 0.0
    %1248 = vmatpush1.msra.mxu0 %v1122
    %1249 = vmatprep.subr.mxu0 0.0
    %1250 = vmatpush1.msra.mxu0 %v1121
    %1251 = vmatprep.subr.mxu0 0.0
    %1252 = vmatpush1.msra.mxu0 %v1120
    %1253 = vmatprep.subr.mxu0 0.0
    %1254 = vmatpush1.msra.mxu0 %v1119
    %1255 = vmatprep.subr.mxu0 0.0
    %1256 = vmatpush1.msra.mxu0 %v1118
    %1257 = vmatprep.subr.mxu0 0.0
    %1258 = vmatpush2.msra.mxu0 0.0
    %1259 = vmatprep.subr.mxu0 0.0
    %1260 = vmatpush2.msra.mxu0 0.0
    %1261 = vmatprep.subr.mxu0 0.0
    %1262 = vmatpush2.msra.mxu0 0.0
    %1263 = vmatprep.subr.mxu0 0.0
    %1264 = vmatpush2.msra.mxu0 0.0
    %1265 = vmatprep.subr.mxu0 0.0
    %1266 = vmatpush2.msra.mxu0 0.0
    %1267 = vmatprep.subr.mxu0 0.0
    %1268 = vmatpush2.msra.mxu0 0.0
    %1269 = vmatprep.subr.mxu0 0.0
    %1270 = vmatpush2.msra.mxu0 0.0
    %1271 = vmatprep.subr.mxu0 0.0
    %1272 = vmatpush2.msra.mxu0 0.0
    %1273 = vmatprep.subr.mxu0 0.0
    %1274 = vmatpush2.msra.mxu0 0.0
    %1275 = vmatprep.subr.mxu0 0.0
    %1276 = vmatpush2.msra.mxu0 0.0
    %1277 = vmatprep.subr.mxu0 0.0
    %1278 = vmatpush2.msra.mxu0 0.0
    %1279 = vmatprep.subr.mxu0 0.0
    %1280 = vmatpush2.msra.mxu0 0.0
    %1281 = vmatprep.subr.mxu0 0.0
    %1282 = vmatpush2.msra.mxu0 0.0
    %1283 = vmatprep.subr.mxu0 0.0
    %1284 = vmatpush2.msra.mxu0 0.0
    %1285 = vmatprep.subr.mxu0 0.0
    %1286 = vmatpush2.msra.mxu0 0.0
    %1287 = vmatprep.subr.mxu0 0.0
    %1288 = vmatpush2.msra.mxu0 0.0
    %1289 = vmatprep.mubr.f32.mxu0 0.0
    %1290 = vmatmul.mubr.f32.gmra.mxu0 %v1223
    %v1291 = vpop.f32.mrf.mxu0
    %v1292 = vadd.f32 0.0, %v1291
    %v1293 = vpop.f32.mrf.mxu0
    %1294 = vdwg.mxu0
    %v1295 = vadd.f32 %v1224, %v1292
    %v1296 = vxor.u32 %v1295, 2147483648
    %v1297 = vmul.f32 %v1296, 1.442695
    %v1298 = vpow.pop %v1297
    %v1299 = vadd.f32 %v1298, 1.0
    %v1300 = vrcp.pop %v1299
    %v1301 = vmul.f32 1.0, %v1300
    %v1302 = vtanh.pop %v1295
    %1303 = vrot.lane.b32.xlu0 %v1301, 96
    %v1304 = vpop.permute.xlu0 %1303
    %1305 = vrot.lane.b32.xlu0 %v1302, 64
    %v1306 = vpop.permute.xlu0 %1305
    %1307 = vrot.lane.b32.xlu0 %v1301, 32
    %v1308 = vpop.permute.xlu0 %1307
    %v1309 = vmul.f32 %v1304, %v1221
    %v1310 = vmul.f32 %v1301, %v1306
    %v1311 = vadd.f32 %v1309, %v1310
    %v1312 = vtanh.pop %v1311
    %v1313 = vmul.f32 %v1308, %v1312
    %v1314 = vld [vmem:[#allocation3 + $0x10] sm:$0xff]
    %1315 = vmatprep.subr.mxu0 0.0
    %1316 = vmatpush1.msra.mxu0 %v1133
    %1317 = vmatprep.subr.mxu0 0.0
    %1318 = vmatpush1.msra.mxu0 %v1132
    %1319 = vmatprep.subr.mxu0 0.0
    %1320 = vmatpush1.msra.mxu0 %v1131
    %1321 = vmatprep.subr.mxu0 0.0
    %1322 = vmatpush1.msra.mxu0 %v1130
    %1323 = vmatprep.subr.mxu0 0.0
    %1324 = vmatpush1.msra.mxu0 %v1129
    %1325 = vmatprep.subr.mxu0 0.0
    %1326 = vmatpush1.msra.mxu0 %v1128
    %1327 = vmatprep.subr.mxu0 0.0
    %1328 = vmatpush1.msra.mxu0 %v1127
    %1329 = vmatprep.subr.mxu0 0.0
    %1330 = vmatpush1.msra.mxu0 %v1126
    %1331 = vmatprep.subr.mxu0 0.0
    %1332 = vmatpush1.msra.mxu0 %v1125
    %1333 = vmatprep.subr.mxu0 0.0
    %1334 = vmatpush1.msra.mxu0 %v1124
    %1335 = vmatprep.subr.mxu0 0.0
    %1336 = vmatpush1.msra.mxu0 %v1123
    %1337 = vmatprep.subr.mxu0 0.0
    %1338 = vmatpush1.msra.mxu0 %v1122
    %1339 = vmatprep.subr.mxu0 0.0
    %1340 = vmatpush1.msra.mxu0 %v1121
    %1341 = vmatprep.subr.mxu0 0.0
    %1342 = vmatpush1.msra.mxu0 %v1120
    %1343 = vmatprep.subr.mxu0 0.0
    %1344 = vmatpush1.msra.mxu0 %v1119
    %1345 = vmatprep.subr.mxu0 0.0
    %1346 = vmatpush1.msra.mxu0 %v1118
    %1347 = vmatprep.subr.mxu0 0.0
    %1348 = vmatpush2.msra.mxu0 0.0
    %1349 = vmatprep.subr.mxu0 0.0
    %1350 = vmatpush2.msra.mxu0 0.0
    %1351 = vmatprep.subr.mxu0 0.0
    %1352 = vmatpush2.msra.mxu0 0.0
    %1353 = vmatprep.subr.mxu0 0.0
    %1354 = vmatpush2.msra.mxu0 0.0
    %1355 = vmatprep.subr.mxu0 0.0
    %1356 = vmatpush2.msra.mxu0 0.0
    %1357 = vmatprep.subr.mxu0 0.0
    %1358 = vmatpush2.msra.mxu0 0.0
    %1359 = vmatprep.subr.mxu0 0.0
    %1360 = vmatpush2.msra.mxu0 0.0
    %1361 = vmatprep.subr.mxu0 0.0
    %1362 = vmatpush2.msra.mxu0 0.0
    %1363 = vmatprep.subr.mxu0 0.0
    %1364 = vmatpush2.msra.mxu0 0.0
    %1365 = vmatprep.subr.mxu0 0.0
    %1366 = vmatpush2.msra.mxu0 0.0
    %1367 = vmatprep.subr.mxu0 0.0
    %1368 = vmatpush2.msra.mxu0 0.0
    %1369 = vmatprep.subr.mxu0 0.0
    %1370 = vmatpush2.msra.mxu0 0.0
    %1371 = vmatprep.subr.mxu0 0.0
    %1372 = vmatpush2.msra.mxu0 0.0
    %1373 = vmatprep.subr.mxu0 0.0
    %1374 = vmatpush2.msra.mxu0 0.0
    %1375 = vmatprep.subr.mxu0 0.0
    %1376 = vmatpush2.msra.mxu0 0.0
    %1377 = vmatprep.subr.mxu0 0.0
    %1378 = vmatpush2.msra.mxu0 0.0
    %1379 = vmatprep.mubr.f32.mxu0 0.0
    %1380 = vmatmul.mubr.f32.gmra.mxu0 %v1313
    %v1381 = vpop.f32.mrf.mxu0
    %v1382 = vadd.f32 0.0, %v1381
    %v1383 = vpop.f32.mrf.mxu0
    %1384 = vdwg.mxu0
    %v1385 = vadd.f32 %v1314, %v1382
    %v1386 = vxor.u32 %v1385, 2147483648
    %v1387 = vmul.f32 %v1386, 1.442695
    %v1388 = vpow.pop %v1387
    %v1389 = vadd.f32 %v1388, 1.0
    %v1390 = vrcp.pop %v1389
    %v1391 = vmul.f32 1.0, %v1390
    %v1392 = vtanh.pop %v1385
    %1393 = vrot.lane.b32.xlu0 %v1391, 96
    %v1394 = vpop.permute.xlu0 %1393
    %1395 = vrot.lane.b32.xlu0 %v1392, 64
    %v1396 = vpop.permute.xlu0 %1395
    %1397 = vrot.lane.b32.xlu0 %v1391, 32
    %v1398 = vpop.permute.xlu0 %1397
    %v1399 = vmul.f32 %v1394, %v1311
    %v1400 = vmul.f32 %v1391, %v1396
    %v1401 = vadd.f32 %v1399, %v1400
    %v1402 = vtanh.pop %v1401
    %v1403 = vmul.f32 %v1398, %v1402
    %v1404 = vld [vmem:[#allocation3 + $0x18] sm:$0xff]
    %1405 = vmatprep.subr.mxu0 0.0
    %1406 = vmatpush1.msra.mxu0 %v1133
    %1407 = vmatprep.subr.mxu0 0.0
    %1408 = vmatpush1.msra.mxu0 %v1132
    %1409 = vmatprep.subr.mxu0 0.0
    %1410 = vmatpush1.msra.mxu0 %v1131
    %1411 = vmatprep.subr.mxu0 0.0
    %1412 = vmatpush1.msra.mxu0 %v1130
    %1413 = vmatprep.subr.mxu0 0.0
    %1414 = vmatpush1.msra.mxu0 %v1129
    %1415 = vmatprep.subr.mxu0 0.0
    %1416 = vmatpush1.msra.mxu0 %v1128
    %1417 = vmatprep.subr.mxu0 0.0
    %1418 = vmatpush1.msra.mxu0 %v1127
    %1419 = vmatprep.subr.mxu0 0.0
    %1420 = vmatpush1.msra.mxu0 %v1126
    %1421 = vmatprep.subr.mxu0 0.0
    %1422 = vmatpush1.msra.mxu0 %v1125
    %1423 = vmatprep.subr.mxu0 0.0
    %1424 = vmatpush1.msra.mxu0 %v1124
    %1425 = vmatprep.subr.mxu0 0.0
    %1426 = vmatpush1.msra.mxu0 %v1123
    %1427 = vmatprep.subr.mxu0 0.0
    %1428 = vmatpush1.msra.mxu0 %v1122
    %1429 = vmatprep.subr.mxu0 0.0
    %1430 = vmatpush1.msra.mxu0 %v1121
    %1431 = vmatprep.subr.mxu0 0.0
    %1432 = vmatpush1.msra.mxu0 %v1120
    %1433 = vmatprep.subr.mxu0 0.0
    %1434 = vmatpush1.msra.mxu0 %v1119
    %1435 = vmatprep.subr.mxu0 0.0
    %1436 = vmatpush1.msra.mxu0 %v1118
    %1437 = vmatprep.subr.mxu0 0.0
    %1438 = vmatpush2.msra.mxu0 0.0
    %1439 = vmatprep.subr.mxu0 0.0
    %1440 = vmatpush2.msra.mxu0 0.0
    %1441 = vmatprep.subr.mxu0 0.0
    %1442 = vmatpush2.msra.mxu0 0.0
    %1443 = vmatprep.subr.mxu0 0.0
    %1444 = vmatpush2.msra.mxu0 0.0
    %1445 = vmatprep.subr.mxu0 0.0
    %1446 = vmatpush2.msra.mxu0 0.0
    %1447 = vmatprep.subr.mxu0 0.0
    %1448 = vmatpush2.msra.mxu0 0.0
    %1449 = vmatprep.subr.mxu0 0.0
    %1450 = vmatpush2.msra.mxu0 0.0
    %1451 = vmatprep.subr.mxu0 0.0
    %1452 = vmatpush2.msra.mxu0 0.0
    %1453 = vmatprep.subr.mxu0 0.0
    %1454 = vmatpush2.msra.mxu0 0.0
    %1455 = vmatprep.subr.mxu0 0.0
    %1456 = vmatpush2.msra.mxu0 0.0
    %1457 = vmatprep.subr.mxu0 0.0
    %1458 = vmatpush2.msra.mxu0 0.0
    %1459 = vmatprep.subr.mxu0 0.0
    %1460 = vmatpush2.msra.mxu0 0.0
    %1461 = vmatprep.subr.mxu0 0.0
    %1462 = vmatpush2.msra.mxu0 0.0
    %1463 = vmatprep.subr.mxu0 0.0
    %1464 = vmatpush2.msra.mxu0 0.0
    %1465 = vmatprep.subr.mxu0 0.0
    %1466 = vmatpush2.msra.mxu0 0.0
    %1467 = vmatprep.subr.mxu0 0.0
    %1468 = vmatpush2.msra.mxu0 0.0
    %1469 = vmatprep.mubr.f32.mxu0 0.0
    %1470 = vmatmul.mubr.f32.gmra.mxu0 %v1403
    %v1471 = vpop.f32.mrf.mxu0
    %v1472 = vadd.f32 0.0, %v1471
    %v1473 = vpop.f32.mrf.mxu0
    %1474 = vdwg.mxu0
    %v1475 = vadd.f32 %v1404, %v1472
    %v1476 = vxor.u32 %v1475, 2147483648
    %v1477 = vmul.f32 %v1476, 1.442695
    %v1478 = vpow.pop %v1477
    %v1479 = vadd.f32 %v1478, 1.0
    %v1480 = vrcp.pop %v1479
    %v1481 = vmul.f32 1.0, %v1480
    %v1482 = vtanh.pop %v1475
    %1483 = vrot.lane.b32.xlu0 %v1481, 96
    %v1484 = vpop.permute.xlu0 %1483
    %1485 = vrot.lane.b32.xlu0 %v1482, 64
    %v1486 = vpop.permute.xlu0 %1485
    %1487 = vrot.lane.b32.xlu0 %v1481, 32
    %v1488 = vpop.permute.xlu0 %1487
    %v1489 = vmul.f32 %v1484, %v1401
    %v1490 = vmul.f32 %v1481, %v1486
    %v1491 = vadd.f32 %v1489, %v1490
    %v1492 = vtanh.pop %v1491
    %v1493 = vmul.f32 %v1488, %v1492
    %v1494 = vld [vmem:[#allocation3 + $0x20] sm:$0xff]
    %1495 = vmatprep.subr.mxu0 0.0
    %1496 = vmatpush1.msra.mxu0 %v1133
    %1497 = vmatprep.subr.mxu0 0.0
    %1498 = vmatpush1.msra.mxu0 %v1132
    %1499 = vmatprep.subr.mxu0 0.0
    %1500 = vmatpush1.msra.mxu0 %v1131
    %1501 = vmatprep.subr.mxu0 0.0
    %1502 = vmatpush1.msra.mxu0 %v1130
    %1503 = vmatprep.subr.mxu0 0.0
    %1504 = vmatpush1.msra.mxu0 %v1129
    %1505 = vmatprep.subr.mxu0 0.0
    %1506 = vmatpush1.msra.mxu0 %v1128
    %1507 = vmatprep.subr.mxu0 0.0
    %1508 = vmatpush1.msra.mxu0 %v1127
    %1509 = vmatprep.subr.mxu0 0.0
    %1510 = vmatpush1.msra.mxu0 %v1126
    %1511 = vmatprep.subr.mxu0 0.0
    %1512 = vmatpush1.msra.mxu0 %v1125
    %1513 = vmatprep.subr.mxu0 0.0
    %1514 = vmatpush1.msra.mxu0 %v1124
    %1515 = vmatprep.subr.mxu0 0.0
    %1516 = vmatpush1.msra.mxu0 %v1123
    %1517 = vmatprep.subr.mxu0 0.0
    %1518 = vmatpush1.msra.mxu0 %v1122
    %1519 = vmatprep.subr.mxu0 0.0
    %1520 = vmatpush1.msra.mxu0 %v1121
    %1521 = vmatprep.subr.mxu0 0.0
    %1522 = vmatpush1.msra.mxu0 %v1120
    %1523 = vmatprep.subr.mxu0 0.0
    %1524 = vmatpush1.msra.mxu0 %v1119
    %1525 = vmatprep.subr.mxu0 0.0
    %1526 = vmatpush1.msra.mxu0 %v1118
    %1527 = vmatprep.subr.mxu0 0.0
    %1528 = vmatpush2.msra.mxu0 0.0
    %1529 = vmatprep.subr.mxu0 0.0
    %1530 = vmatpush2.msra.mxu0 0.0
    %1531 = vmatprep.subr.mxu0 0.0
    %1532 = vmatpush2.msra.mxu0 0.0
    %1533 = vmatprep.subr.mxu0 0.0
    %1534 = vmatpush2.msra.mxu0 0.0
    %1535 = vmatprep.subr.mxu0 0.0
    %1536 = vmatpush2.msra.mxu0 0.0
    %1537 = vmatprep.subr.mxu0 0.0
    %1538 = vmatpush2.msra.mxu0 0.0
    %1539 = vmatprep.subr.mxu0 0.0
    %1540 = vmatpush2.msra.mxu0 0.0
    %1541 = vmatprep.subr.mxu0 0.0
    %1542 = vmatpush2.msra.mxu0 0.0
    %1543 = vmatprep.subr.mxu0 0.0
    %1544 = vmatpush2.msra.mxu0 0.0
    %1545 = vmatprep.subr.mxu0 0.0
    %1546 = vmatpush2.msra.mxu0 0.0
    %1547 = vmatprep.subr.mxu0 0.0
    %1548 = vmatpush2.msra.mxu0 0.0
    %1549 = vmatprep.subr.mxu0 0.0
    %1550 = vmatpush2.msra.mxu0 0.0
    %1551 = vmatprep.subr.mxu0 0.0
    %1552 = vmatpush2.msra.mxu0 0.0
    %1553 = vmatprep.subr.mxu0 0.0
    %1554 = vmatpush2.msra.mxu0 0.0
    %1555 = vmatprep.subr.mxu0 0.0
    %1556 = vmatpush2.msra.mxu0 0.0
    %1557 = vmatprep.subr.mxu0 0.0
    %1558 = vmatpush2.msra.mxu0 0.0
    %1559 = vmatprep.mubr.f32.mxu0 0.0
    %1560 = vmatmul.mubr.f32.gmra.mxu0 %v1493
    %v1561 = vpop.f32.mrf.mxu0
    %v1562 = vadd.f32 0.0, %v1561
    %v1563 = vpop.f32.mrf.mxu0
    %1564 = vdwg.mxu0
    %v1565 = vadd.f32 %v1494, %v1562
    %v1566 = vxor.u32 %v1565, 2147483648
    %v1567 = vmul.f32 %v1566, 1.442695
    %v1568 = vpow.pop %v1567
    %v1569 = vadd.f32 %v1568, 1.0
    %v1570 = vrcp.pop %v1569
    %v1571 = vmul.f32 1.0, %v1570
    %v1572 = vtanh.pop %v1565
    %1573 = vrot.lane.b32.xlu0 %v1571, 96
    %v1574 = vpop.permute.xlu0 %1573
    %1575 = vrot.lane.b32.xlu0 %v1572, 64
    %v1576 = vpop.permute.xlu0 %1575
    %1577 = vrot.lane.b32.xlu0 %v1571, 32
    %v1578 = vpop.permute.xlu0 %1577
    %v1579 = vmul.f32 %v1574, %v1491
    %v1580 = vmul.f32 %v1571, %v1576
    %v1581 = vadd.f32 %v1579, %v1580
    %v1582 = vtanh.pop %v1581
    %v1583 = vmul.f32 %v1578, %v1582
    %v1584 = vld [vmem:[#allocation3 + $0x28] sm:$0xff]
    %1585 = vmatprep.subr.mxu0 0.0
    %1586 = vmatpush1.msra.mxu0 %v1133
    %1587 = vmatprep.subr.mxu0 0.0
    %1588 = vmatpush1.msra.mxu0 %v1132
    %1589 = vmatprep.subr.mxu0 0.0
    %1590 = vmatpush1.msra.mxu0 %v1131
    %1591 = vmatprep.subr.mxu0 0.0
    %1592 = vmatpush1.msra.mxu0 %v1130
    %1593 = vmatprep.subr.mxu0 0.0
    %1594 = vmatpush1.msra.mxu0 %v1129
    %1595 = vmatprep.subr.mxu0 0.0
    %1596 = vmatpush1.msra.mxu0 %v1128
    %1597 = vmatprep.subr.mxu0 0.0
    %1598 = vmatpush1.msra.mxu0 %v1127
    %1599 = vmatprep.subr.mxu0 0.0
    %1600 = vmatpush1.msra.mxu0 %v1126
    %1601 = vmatprep.subr.mxu0 0.0
    %1602 = vmatpush1.msra.mxu0 %v1125
    %1603 = vmatprep.subr.mxu0 0.0
    %1604 = vmatpush1.msra.mxu0 %v1124
    %1605 = vmatprep.subr.mxu0 0.0
    %1606 = vmatpush1.msra.mxu0 %v1123
    %1607 = vmatprep.subr.mxu0 0.0
    %1608 = vmatpush1.msra.mxu0 %v1122
    %1609 = vmatprep.subr.mxu0 0.0
    %1610 = vmatpush1.msra.mxu0 %v1121
    %1611 = vmatprep.subr.mxu0 0.0
    %1612 = vmatpush1.msra.mxu0 %v1120
    %1613 = vmatprep.subr.mxu0 0.0
    %1614 = vmatpush1.msra.mxu0 %v1119
    %1615 = vmatprep.subr.mxu0 0.0
    %1616 = vmatpush1.msra.mxu0 %v1118
    %1617 = vmatprep.subr.mxu0 0.0
    %1618 = vmatpush2.msra.mxu0 0.0
    %1619 = vmatprep.subr.mxu0 0.0
    %1620 = vmatpush2.msra.mxu0 0.0
    %1621 = vmatprep.subr.mxu0 0.0
    %1622 = vmatpush2.msra.mxu0 0.0
    %1623 = vmatprep.subr.mxu0 0.0
    %1624 = vmatpush2.msra.mxu0 0.0
    %1625 = vmatprep.subr.mxu0 0.0
    %1626 = vmatpush2.msra.mxu0 0.0
    %1627 = vmatprep.subr.mxu0 0.0
    %1628 = vmatpush2.msra.mxu0 0.0
    %1629 = vmatprep.subr.mxu0 0.0
    %1630 = vmatpush2.msra.mxu0 0.0
    %1631 = vmatprep.subr.mxu0 0.0
    %1632 = vmatpush2.msra.mxu0 0.0
    %1633 = vmatprep.subr.mxu0 0.0
    %1634 = vmatpush2.msra.mxu0 0.0
    %1635 = vmatprep.subr.mxu0 0.0
    %1636 = vmatpush2.msra.mxu0 0.0
    %1637 = vmatprep.subr.mxu0 0.0
    %1638 = vmatpush2.msra.mxu0 0.0
    %1639 = vmatprep.subr.mxu0 0.0
    %1640 = vmatpush2.msra.mxu0 0.0
    %1641 = vmatprep.subr.mxu0 0.0
    %1642 = vmatpush2.msra.mxu0 0.0
    %1643 = vmatprep.subr.mxu0 0.0
    %1644 = vmatpush2.msra.mxu0 0.0
    %1645 = vmatprep.subr.mxu0 0.0
    %1646 = vmatpush2.msra.mxu0 0.0
    %1647 = vmatprep.subr.mxu0 0.0
    %1648 = vmatpush2.msra.mxu0 0.0
    %1649 = vmatprep.mubr.f32.mxu0 0.0
    %1650 = vmatmul.mubr.f32.gmra.mxu0 %v1583
    %v1651 = vpop.f32.mrf.mxu0
    %v1652 = vadd.f32 0.0, %v1651
    %v1653 = vpop.f32.mrf.mxu0
    %1654 = vdwg.mxu0
    %v1655 = vadd.f32 %v1584, %v1652
    %v1656 = vxor.u32 %v1655, 2147483648
    %v1657 = vmul.f32 %v1656, 1.442695
    %v1658 = vpow.pop %v1657
    %v1659 = vadd.f32 %v1658, 1.0
    %v1660 = vrcp.pop %v1659
    %v1661 = vmul.f32 1.0, %v1660
    %v1662 = vtanh.pop %v1655
    %1663 = vrot.lane.b32.xlu0 %v1661, 96
    %v1664 = vpop.permute.xlu0 %1663
    %1665 = vrot.lane.b32.xlu0 %v1662, 64
    %v1666 = vpop.permute.xlu0 %1665
    %1667 = vrot.lane.b32.xlu0 %v1661, 32
    %v1668 = vpop.permute.xlu0 %1667
    %v1669 = vmul.f32 %v1664, %v1581
    %v1670 = vmul.f32 %v1661, %v1666
    %v1671 = vadd.f32 %v1669, %v1670
    %v1672 = vtanh.pop %v1671
    %v1673 = vmul.f32 %v1668, %v1672
    %v1674 = vld [vmem:[#allocation3 + $0x30] sm:$0xff]
    %1675 = vmatprep.subr.mxu0 0.0
    %1676 = vmatpush1.msra.mxu0 %v1133
    %1677 = vmatprep.subr.mxu0 0.0
    %1678 = vmatpush1.msra.mxu0 %v1132
    %1679 = vmatprep.subr.mxu0 0.0
    %1680 = vmatpush1.msra.mxu0 %v1131
    %1681 = vmatprep.subr.mxu0 0.0
    %1682 = vmatpush1.msra.mxu0 %v1130
    %1683 = vmatprep.subr.mxu0 0.0
    %1684 = vmatpush1.msra.mxu0 %v1129
    %1685 = vmatprep.subr.mxu0 0.0
    %1686 = vmatpush1.msra.mxu0 %v1128
    %1687 = vmatprep.subr.mxu0 0.0
    %1688 = vmatpush1.msra.mxu0 %v1127
    %1689 = vmatprep.subr.mxu0 0.0
    %1690 = vmatpush1.msra.mxu0 %v1126
    %1691 = vmatprep.subr.mxu0 0.0
    %1692 = vmatpush1.msra.mxu0 %v1125
    %1693 = vmatprep.subr.mxu0 0.0
    %1694 = vmatpush1.msra.mxu0 %v1124
    %1695 = vmatprep.subr.mxu0 0.0
    %1696 = vmatpush1.msra.mxu0 %v1123
    %1697 = vmatprep.subr.mxu0 0.0
    %1698 = vmatpush1.msra.mxu0 %v1122
    %1699 = vmatprep.subr.mxu0 0.0
    %1700 = vmatpush1.msra.mxu0 %v1121
    %1701 = vmatprep.subr.mxu0 0.0
    %1702 = vmatpush1.msra.mxu0 %v1120
    %1703 = vmatprep.subr.mxu0 0.0
    %1704 = vmatpush1.msra.mxu0 %v1119
    %1705 = vmatprep.subr.mxu0 0.0
    %1706 = vmatpush1.msra.mxu0 %v1118
    %1707 = vmatprep.subr.mxu0 0.0
    %1708 = vmatpush2.msra.mxu0 0.0
    %1709 = vmatprep.subr.mxu0 0.0
    %1710 = vmatpush2.msra.mxu0 0.0
    %1711 = vmatprep.subr.mxu0 0.0
    %1712 = vmatpush2.msra.mxu0 0.0
    %1713 = vmatprep.subr.mxu0 0.0
    %1714 = vmatpush2.msra.mxu0 0.0
    %1715 = vmatprep.subr.mxu0 0.0
    %1716 = vmatpush2.msra.mxu0 0.0
    %1717 = vmatprep.subr.mxu0 0.0
    %1718 = vmatpush2.msra.mxu0 0.0
    %1719 = vmatprep.subr.mxu0 0.0
    %1720 = vmatpush2.msra.mxu0 0.0
    %1721 = vmatprep.subr.mxu0 0.0
    %1722 = vmatpush2.msra.mxu0 0.0
    %1723 = vmatprep.subr.mxu0 0.0
    %1724 = vmatpush2.msra.mxu0 0.0
    %1725 = vmatprep.subr.mxu0 0.0
    %1726 = vmatpush2.msra.mxu0 0.0
    %1727 = vmatprep.subr.mxu0 0.0
    %1728 = vmatpush2.msra.mxu0 0.0
    %1729 = vmatprep.subr.mxu0 0.0
    %1730 = vmatpush2.msra.mxu0 0.0
    %1731 = vmatprep.subr.mxu0 0.0
    %1732 = vmatpush2.msra.mxu0 0.0
    %1733 = vmatprep.subr.mxu0 0.0
    %1734 = vmatpush2.msra.mxu0 0.0
    %1735 = vmatprep.subr.mxu0 0.0
    %1736 = vmatpush2.msra.mxu0 0.0
    %1737 = vmatprep.subr.mxu0 0.0
    %1738 = vmatpush2.msra.mxu0 0.0
    %1739 = vmatprep.mubr.f32.mxu0 0.0
    %1740 = vmatmul.mubr.f32.gmra.mxu0 %v1673
    %v1741 = vpop.f32.mrf.mxu0
    %v1742 = vadd.f32 0.0, %v1741
    %v1743 = vpop.f32.mrf.mxu0
    %1744 = vdwg.mxu0
    %v1745 = vadd.f32 %v1674, %v1742
    %v1746 = vxor.u32 %v1745, 2147483648
    %v1747 = vmul.f32 %v1746, 1.442695
    %v1748 = vpow.pop %v1747
    %v1749 = vadd.f32 %v1748, 1.0
    %v1750 = vrcp.pop %v1749
    %v1751 = vmul.f32 1.0, %v1750
    %v1752 = vtanh.pop %v1745
    %1753 = vrot.lane.b32.xlu0 %v1751, 96
    %v1754 = vpop.permute.xlu0 %1753
    %1755 = vrot.lane.b32.xlu0 %v1752, 64
    %v1756 = vpop.permute.xlu0 %1755
    %1757 = vrot.lane.b32.xlu0 %v1751, 32
    %v1758 = vpop.permute.xlu0 %1757
    %v1759 = vmul.f32 %v1754, %v1671
    %v1760 = vmul.f32 %v1751, %v1756
    %v1761 = vadd.f32 %v1759, %v1760
    %v1762 = vtanh.pop %v1761
    %v1763 = vmul.f32 %v1758, %v1762
    %v1764 = vld [vmem:[#allocation3 + $0x38] sm:$0xff]
    %1765 = vmatprep.subr.mxu0 0.0
    %1766 = vmatpush1.msra.mxu0 %v1133
    %1767 = vmatprep.subr.mxu0 0.0
    %1768 = vmatpush1.msra.mxu0 %v1132
    %1769 = vmatprep.subr.mxu0 0.0
    %1770 = vmatpush1.msra.mxu0 %v1131
    %1771 = vmatprep.subr.mxu0 0.0
    %1772 = vmatpush1.msra.mxu0 %v1130
    %1773 = vmatprep.subr.mxu0 0.0
    %1774 = vmatpush1.msra.mxu0 %v1129
    %1775 = vmatprep.subr.mxu0 0.0
    %1776 = vmatpush1.msra.mxu0 %v1128
    %1777 = vmatprep.subr.mxu0 0.0
    %1778 = vmatpush1.msra.mxu0 %v1127
    %1779 = vmatprep.subr.mxu0 0.0
    %1780 = vmatpush1.msra.mxu0 %v1126
    %1781 = vmatprep.subr.mxu0 0.0
    %1782 = vmatpush1.msra.mxu0 %v1125
    %1783 = vmatprep.subr.mxu0 0.0
    %1784 = vmatpush1.msra.mxu0 %v1124
    %1785 = vmatprep.subr.mxu0 0.0
    %1786 = vmatpush1.msra.mxu0 %v1123
    %1787 = vmatprep.subr.mxu0 0.0
    %1788 = vmatpush1.msra.mxu0 %v1122
    %1789 = vmatprep.subr.mxu0 0.0
    %1790 = vmatpush1.msra.mxu0 %v1121
    %1791 = vmatprep.subr.mxu0 0.0
    %1792 = vmatpush1.msra.mxu0 %v1120
    %1793 = vmatprep.subr.mxu0 0.0
    %1794 = vmatpush1.msra.mxu0 %v1119
    %1795 = vmatprep.subr.mxu0 0.0
    %1796 = vmatpush1.msra.mxu0 %v1118
    %1797 = vmatprep.subr.mxu0 0.0
    %1798 = vmatpush2.msra.mxu0 0.0
    %1799 = vmatprep.subr.mxu0 0.0
    %1800 = vmatpush2.msra.mxu0 0.0
    %1801 = vmatprep.subr.mxu0 0.0
    %1802 = vmatpush2.msra.mxu0 0.0
    %1803 = vmatprep.subr.mxu0 0.0
    %1804 = vmatpush2.msra.mxu0 0.0
    %1805 = vmatprep.subr.mxu0 0.0
    %1806 = vmatpush2.msra.mxu0 0.0
    %1807 = vmatprep.subr.mxu0 0.0
    %1808 = vmatpush2.msra.mxu0 0.0
    %1809 = vmatprep.subr.mxu0 0.0
    %1810 = vmatpush2.msra.mxu0 0.0
    %1811 = vmatprep.subr.mxu0 0.0
    %1812 = vmatpush2.msra.mxu0 0.0
    %1813 = vmatprep.subr.mxu0 0.0
    %1814 = vmatpush2.msra.mxu0 0.0
    %1815 = vmatprep.subr.mxu0 0.0
    %1816 = vmatpush2.msra.mxu0 0.0
    %1817 = vmatprep.subr.mxu0 0.0
    %1818 = vmatpush2.msra.mxu0 0.0
    %1819 = vmatprep.subr.mxu0 0.0
    %1820 = vmatpush2.msra.mxu0 0.0
    %1821 = vmatprep.subr.mxu0 0.0
    %1822 = vmatpush2.msra.mxu0 0.0
    %1823 = vmatprep.subr.mxu0 0.0
    %1824 = vmatpush2.msra.mxu0 0.0
    %1825 = vmatprep.subr.mxu0 0.0
    %1826 = vmatpush2.msra.mxu0 0.0
    %1827 = vmatprep.subr.mxu0 0.0
    %1828 = vmatpush2.msra.mxu0 0.0
    %1829 = vmatprep.mubr.f32.mxu0 0.0
    %1830 = vmatmul.mubr.f32.gmra.mxu0 %v1763
    %v1831 = vpop.f32.mrf.mxu0
    %v1832 = vadd.f32 0.0, %v1831
    %v1833 = vpop.f32.mrf.mxu0
    %1834 = vdwg.mxu0
    %v1835 = vadd.f32 %v1764, %v1832
    %v1836 = vxor.u32 %v1835, 2147483648
    %v1837 = vmul.f32 %v1836, 1.442695
    %v1838 = vpow.pop %v1837
    %v1839 = vadd.f32 %v1838, 1.0
    %v1840 = vrcp.pop %v1839
    %v1841 = vmul.f32 1.0, %v1840
    %v1842 = vtanh.pop %v1835
    %1843 = vrot.lane.b32.xlu0 %v1841, 96
    %v1844 = vpop.permute.xlu0 %1843
    %1845 = vrot.lane.b32.xlu0 %v1842, 64
    %v1846 = vpop.permute.xlu0 %1845
    %1847 = vrot.lane.b32.xlu0 %v1841, 32
    %v1848 = vpop.permute.xlu0 %1847
    %v1849 = vmul.f32 %v1844, %v1761
    %v1850 = vmul.f32 %v1841, %v1846
    %v1851 = vadd.f32 %v1849, %v1850
    %v1852 = vtanh.pop %v1851
    %v1853 = vmul.f32 %v1848, %v1852
    %v1855 = vrot.slane %v1493, 1
    %vm1857 = vcmask 1040384
    %v1858 = vsel %vm1857, %v1855, %v1853
    %v1859 = vld [vmem:[%s7] sm:$0x1]
    %v1861 = vlaneseq
    %v1862 = vshrl.u32 %v1861, 7
    %v1863 = vsub.s32 0, %v1862
    %v1864 = vrot.slane %v1859, %v1863
    %v1866 = vmul.f32 %v1858, %v1864
    %vm1867 = vcmask 1041408
    %v1868 = vsel %vm1867, %v1866, 0.0
    %1869 = vadd.xlane.f32.xlu0 %v1868
    %v1870 = vpop.xlane.xlu0 %1869
    %v1871 = vld [vmem:[#allocation4] sm:$0x1]
    %v1873 = vlaneseq
    %v1874 = vshrl.u32 %v1873, 7
    %v1875 = vsub.s32 0, %v1874
    %v1876 = vrot.slane %v1871, %v1875
    %v1878 = vadd.f32 %v1870, %v1876
    %vm1879 = vcmask 1024
    %1880 = vst.msk [vmem:[%s9] sm:$0x3] %vm1879, %v1878
    // Predicated region
    $region50: #{tpu_custom_call.1} parent=1 // pred_check
      _
    $region51: #{tpu_custom_call.1} parent=1 // pred_check_branch
      %1882 = sbr.rel (0) target = $region53
    $region52: #{tpu_custom_call.1} parent=1 // pred_region
      _
    $region53: #{tpu_custom_call.1} parent=1 // pred_fallthru
      _
    // Predicated region
    $region54: #{tpu_custom_call.1} parent=1 // pred_check
      _
    $region55: #{tpu_custom_call.1} parent=1 // pred_check_branch
      %1884 = sbr.rel (0) target = $region57
    $region56: #{tpu_custom_call.1} parent=1 // pred_region
      _
    $region57: #{tpu_custom_call.1} parent=1 // pred_fallthru
      _
    %1885 = vsyncpa [#allocation6], 1
    %1886 = vsyncpa [#allocation8], 1

</llo_original>
